<compile_context>
chip_gen: v5e
topology: v5e:2x2
jax: 0.10.0
libtpu: 0.0.40
codegen_flags: <defaults>
</compile_context>

<pallas_src>
import functools

import jax
import jax.numpy as jnp
from jax.experimental import pallas as pl
from jax.experimental.pallas import tpu as pltpu

# ---- small config consistent with the module -------------------------------
TEMPORAL_WINDOW = 16      # time_window * 2
ZDIMS = 16
NUM_FEATURES = 12
FUTURE_STEPS = 8
HIDDEN_SIZE_PRED = 32
BATCH = 4


# ---------------------------------------------------------------------------
# Fused kernel: latent_to_hidden + bidirectional GRU + hidden_to_output.
#   z_ref    : (B, Z)
#   x_ref    : (T*B, Z)      time-major, flattened (row t*B + b = step t, batch b)
#   wlh/blh  : (Z, 2H), (1, 2H)
#   wi*      : (Z, 3H)       packed input weights, gate order r|z|n
#   wh*      : (H, 3H)       packed hidden weights
#   bgi*     : (1, 3H)       [b_ih_r+b_hh_r | b_ih_z+b_hh_z | b_ih_n]
#   bhn*     : (1, H)        b_hh_n (must stay inside r * (...))
#   woutf/b  : (H, F)        output projection split per direction
#   bout     : (1, F)
#   y_ref    : (T*B, F)      prediction, time-major flattened
#   scratch  : h0_scr (2B,H), hf_scr (T*B,H), hb_scr (T*B,H)
# ---------------------------------------------------------------------------
def _decoder_future_kernel(z_ref, x_ref,
                           wlh_ref, blh_ref,
                           wif_ref, whf_ref, bgif_ref, bhnf_ref,
                           wib_ref, whb_ref, bgib_ref, bhnb_ref,
                           woutf_ref, woutb_ref, bout_ref,
                           y_ref,
                           h0_scr, hf_scr, hb_scr,
                           *, T, B):
    H = whf_ref.shape[0]

    # ---- latent_to_hidden (fused) + exact PyTorch .view(2, B, H) split -----
    hidden = (jnp.dot(z_ref[...], wlh_ref[...],
                      preferred_element_type=jnp.float32)
              + blh_ref[...])                                    # (B, 2H)
    # row-major flatten of (B, 2H) reinterpreted as (2B, H):
    #   row 2b   = hidden[b, :H],  row 2b+1 = hidden[b, H:]
    for b in range(B):
        h0_scr[2 * b:2 * b + 1, :] = hidden[b:b + 1, 0:H]
        h0_scr[2 * b + 1:2 * b + 2, :] = hidden[b:b + 1, H:2 * H]
    h0f = h0_scr[0:B, :]          # direction 0 (forward) initial hidden
    h0b = h0_scr[B:2 * B, :]      # direction 1 (backward) initial hidden

    # ---- hoisted input projections (no sequential dependence) --------------
    x_flat = x_ref[...]                                          # (T*B, Z)
    gi_f = (jnp.dot(x_flat, wif_ref[...],
                    preferred_element_type=jnp.float32) + bgif_ref[...])
    gi_b = (jnp.dot(x_flat, wib_ref[...],
                    preferred_element_type=jnp.float32) + bgib_ref[...])

    whf = whf_ref[...]
    whb = whb_ref[...]
    bhnf = bhnf_ref[...]
    bhnb = bhnb_ref[...]

    def gru_step(gi_t, h, wh, bhn):
        # single packed hidden matmul per step (gates r|z|n)
        gh = jnp.dot(h, wh, preferred_element_type=jnp.float32)  # (B, 3H)
        rz = jax.nn.sigmoid(gi_t[:, 0:2 * H] + gh[:, 0:2 * H])   # r and z together
        r = rz[:, 0:H]
        u = rz[:, H:2 * H]
        n = jnp.tanh(gi_t[:, 2 * H:3 * H] + r * (gh[:, 2 * H:3 * H] + bhn))
        return (1.0 - u) * n + u * h

    # ---- forward direction (fully unrolled; T is small & static) -----------
    h = h0f
    for t in range(T):
        h = gru_step(gi_f[t * B:(t + 1) * B, :], h, whf, bhnf)
        hf_scr[t * B:(t + 1) * B, :] = h

    # ---- backward direction -------------------------------------------------
    h = h0b
    for i in range(T):
        t = T - 1 - i
        h = gru_step(gi_b[t * B:(t + 1) * B, :], h, whb, bhnb)
        hb_scr[t * B:(t + 1) * B, :] = h

    # ---- output projection epilogue: one matmul per direction + one store --
    y_ref[...] = (jnp.dot(hf_scr[...], woutf_ref[...],
                          preferred_element_type=jnp.float32)
                  + jnp.dot(hb_scr[...], woutb_ref[...],
                            preferred_element_type=jnp.float32)
                  + bout_ref[...])


# ---------------------------------------------------------------------------
# Parameter init (deterministic, synthetic) — shapes match nn.GRU / nn.Linear.
# ---------------------------------------------------------------------------
def init_params(key):
    H, Z, F = HIDDEN_SIZE_PRED, ZDIMS, NUM_FEATURES
    ks = jax.random.split(key, 12)
    s = 0.1
    return {
        "W_lh": s * jax.random.normal(ks[0], (2 * H, Z), jnp.float32),
        "b_lh": s * jax.random.normal(ks[1], (2 * H,), jnp.float32),
        "W_ih_f": s * jax.random.normal(ks[2], (3 * H, Z), jnp.float32),
        "W_hh_f": s * jax.random.normal(ks[3], (3 * H, H), jnp.float32),
        "b_ih_f": s * jax.random.normal(ks[4], (3 * H,), jnp.float32),
        "b_hh_f": s * jax.random.normal(ks[5], (3 * H,), jnp.float32),
        "W_ih_b": s * jax.random.normal(ks[6], (3 * H, Z), jnp.float32),
        "W_hh_b": s * jax.random.normal(ks[7], (3 * H, H), jnp.float32),
        "b_ih_b": s * jax.random.normal(ks[8], (3 * H,), jnp.float32),
        "b_hh_b": s * jax.random.normal(ks[9], (3 * H,), jnp.float32),
        "W_out": s * jax.random.normal(ks[10], (F, 2 * H), jnp.float32),
        "b_out": s * jax.random.normal(ks[11], (F,), jnp.float32),
    }


# ---------------------------------------------------------------------------
# One-time weight repacking (hoisted out of the per-call forward path).
# ---------------------------------------------------------------------------
def pack_params(p):
    H, F = HIDDEN_SIZE_PRED, NUM_FEATURES

    def pack_dir(Wih, Whh, bih, bhh):
        wi = Wih.T                                  # (in, 3H), columns r|z|n
        wh = Whh.T                                  # (H, 3H)
        bgi = jnp.concatenate(
            [bih[:2 * H] + bhh[:2 * H], bih[2 * H:]]).reshape(1, 3 * H)
        bhn = bhh[2 * H:].reshape(1, H)
        return wi, wh, bgi, bhn

    wif, whf, bgif, bhnf = pack_dir(p["W_ih_f"], p["W_hh_f"],
                                    p["b_ih_f"], p["b_hh_f"])
    wib, whb, bgib, bhnb = pack_dir(p["W_ih_b"], p["W_hh_b"],
                                    p["b_ih_b"], p["b_hh_b"])
    return {
        "wlh": p["W_lh"].T, "blh": p["b_lh"].reshape(1, 2 * H),
        "wif": wif, "whf": whf, "bgif": bgif, "bhnf": bhnf,
        "wib": wib, "whb": whb, "bgib": bgib, "bhnb": bhnb,
        "woutf": p["W_out"][:, :H].T,               # (H, F) forward half
        "woutb": p["W_out"][:, H:].T,               # (H, F) backward half
        "bout": p["b_out"].reshape(1, F),
    }


# ---------------------------------------------------------------------------
# Forward wrapper (single pallas_call; only tiny data-layout glue per call).
# ---------------------------------------------------------------------------
def decoder_future_forward(inputs, z, pk):
    B, _, Z = inputs.shape
    T = FUTURE_STEPS
    H = pk["whf"].shape[0]
    F = pk["bout"].shape[1]

    x = inputs[:, :T, :]                              # inputs[:, :future_steps, :]
    x_flat = jnp.transpose(x, (1, 0, 2)).reshape(T * B, Z)   # time-major, flat

    kernel = functools.partial(_decoder_future_kernel, T=T, B=B)

    # TODO(synk): for large real batches, add a grid axis over batch tiles with
    # dimension_semantics=("parallel",) so the second TensorCore on v7x is used.
    y_flat = pl.pallas_call(
        kernel,
        out_shape=jax.ShapeDtypeStruct((T * B, F), jnp.float32),
        in_specs=[pl.BlockSpec(memory_space=pltpu.MemorySpace.VMEM)] * 15,
        out_specs=pl.BlockSpec(memory_space=pltpu.MemorySpace.VMEM),
        scratch_shapes=[
            pltpu.VMEM((2 * B, H), jnp.float32),      # h0 (view(2,B,H) interleave)
            pltpu.VMEM((T * B, H), jnp.float32),      # forward hidden states
            pltpu.VMEM((T * B, H), jnp.float32),      # backward hidden states
        ],
    )(z, x_flat,
      pk["wlh"], pk["blh"],
      pk["wif"], pk["whf"], pk["bgif"], pk["bhnf"],
      pk["wib"], pk["whb"], pk["bgib"], pk["bhnb"],
      pk["woutf"], pk["woutb"], pk["bout"])

    return jnp.transpose(y_flat.reshape(T, B, F), (1, 0, 2))   # (B, T, F)


# ---------------------------------------------------------------------------
# Pure-JAX reference (mirrors PyTorch semantics, uses the RAW params).
# ---------------------------------------------------------------------------
def reference_forward(inputs, z, p):
    B = inputs.shape[0]
    H, T = HIDDEN_SIZE_PRED, FUTURE_STEPS
    hidden = z @ p["W_lh"].T + p["b_lh"]
    h0 = hidden.reshape(2, B, H)
    x = inputs[:, :T, :]

    def run_dir(xs, h, Wih, Whh, bih, bhh):
        outs = []
        for t in range(xs.shape[1]):
            xt = xs[:, t, :]
            gi = xt @ Wih.T + bih
            gh = h @ Whh.T + bhh
            r = jax.nn.sigmoid(gi[:, :H] + gh[:, :H])
            u = jax.nn.sigmoid(gi[:, H:2 * H] + gh[:, H:2 * H])
            n = jnp.tanh(gi[:, 2 * H:] + r * gh[:, 2 * H:])
            h = (1.0 - u) * n + u * h
            outs.append(h)
        return jnp.stack(outs, axis=1)

    out_f = run_dir(x, h0[0], p["W_ih_f"], p["W_hh_f"], p["b_ih_f"], p["b_hh_f"])
    out_b = run_dir(x[:, ::-1, :], h0[1],
                    p["W_ih_b"], p["W_hh_b"], p["b_ih_b"], p["b_hh_b"])[:, ::-1, :]
    dec = jnp.concatenate([out_f, out_b], axis=-1)
    return dec @ p["W_out"].T + p["b_out"]


if __name__ == "__main__":
    key = jax.random.PRNGKey(0)
    kp, ki, kz = jax.random.split(key, 3)
    params = init_params(kp)
    packed = pack_params(params)           # one-time repack, outside forward path

    inputs = jax.random.normal(ki, (BATCH, TEMPORAL_WINDOW, ZDIMS), jnp.float32)
    z = jax.random.normal(kz, (BATCH, ZDIMS), jnp.float32)

    fwd = jax.jit(decoder_future_forward)
    out = jax.block_until_ready(fwd(inputs, z, packed))
    assert out.shape == (BATCH, FUTURE_STEPS, NUM_FEATURES)

    ref = reference_forward(inputs, z, params)
    max_err = float(jnp.max(jnp.abs(out - ref)))
    assert max_err < 1e-4, f"mismatch vs reference: {max_err}"

    print("KERNEL_OK")
</pallas_src>

<mosaic_0001>
module attributes {stable_mosaic.version = 11 : i64} {
  func.func @_decoder_future_kernel(%arg0: memref<4x16xf32, #tpu.memory_space<vmem>>, %arg1: memref<32x16xf32, #tpu.memory_space<vmem>>, %arg2: memref<16x64xf32, #tpu.memory_space<vmem>>, %arg3: memref<1x64xf32, #tpu.memory_space<vmem>>, %arg4: memref<16x96xf32, #tpu.memory_space<vmem>>, %arg5: memref<32x96xf32, #tpu.memory_space<vmem>>, %arg6: memref<1x96xf32, #tpu.memory_space<vmem>>, %arg7: memref<1x32xf32, #tpu.memory_space<vmem>>, %arg8: memref<16x96xf32, #tpu.memory_space<vmem>>, %arg9: memref<32x96xf32, #tpu.memory_space<vmem>>, %arg10: memref<1x96xf32, #tpu.memory_space<vmem>>, %arg11: memref<1x32xf32, #tpu.memory_space<vmem>>, %arg12: memref<32x12xf32, #tpu.memory_space<vmem>>, %arg13: memref<32x12xf32, #tpu.memory_space<vmem>>, %arg14: memref<1x12xf32, #tpu.memory_space<vmem>>, %arg15: memref<32x12xf32, #tpu.memory_space<vmem>>, %arg16: memref<8x32xf32, #tpu.memory_space<vmem>>, %arg17: memref<32x32xf32, #tpu.memory_space<vmem>>, %arg18: memref<32x32xf32, #tpu.memory_space<vmem>>) attributes {dimension_semantics = [], scalar_prefetch = 0 : i64, scratch_operands = 3 : i64, tpu.core_type = #tpu.core_type<tc>} {
    %c0 = arith.constant 0 : index
    %c0_0 = arith.constant 0 : index
    %0 = vector.load %arg0[%c0, %c0_0] : memref<4x16xf32, #tpu.memory_space<vmem>>, vector<4x16xf32>
    %c0_1 = arith.constant 0 : index
    %c0_2 = arith.constant 0 : index
    %1 = vector.load %arg2[%c0_1, %c0_2] : memref<16x64xf32, #tpu.memory_space<vmem>>, vector<16x64xf32>
    %cst = arith.constant dense<0.000000e+00> : vector<4x64xf32>
    %2 = tpu.matmul %0, %1, %cst {dimension_numbers = #tpu.dot_dimension_numbers<[1], [0], [0], [1], [0, 0, 1, 1], [], []>} : vector<4x16xf32>, vector<16x64xf32>, vector<4x64xf32> -> vector<4x64xf32>
    %c0_3 = arith.constant 0 : index
    %c0_4 = arith.constant 0 : index
    %3 = vector.load %arg3[%c0_3, %c0_4] : memref<1x64xf32, #tpu.memory_space<vmem>>, vector<1x64xf32>
    %4 = vector.broadcast %3 : vector<1x64xf32> to vector<4x64xf32>
    %5 = arith.addf %2, %4 : vector<4x64xf32>
    %6 = vector.extract_strided_slice %5 {offsets = [0, 0], sizes = [1, 32], strides = [1, 1]} : vector<4x64xf32> to vector<1x32xf32>
    %c0_5 = arith.constant 0 : index
    %c0_6 = arith.constant 0 : index
    %7 = vector.load %arg16[%c0_5, %c0_6] : memref<8x32xf32, #tpu.memory_space<vmem>>, vector<1x32xf32>
    tpu.vector_store %arg16[%c0_5, %c0_6], %6 {strides = array<i32>} : memref<8x32xf32, #tpu.memory_space<vmem>>, vector<1x32xf32>,
    %8 = vector.extract_strided_slice %5 {offsets = [0, 32], sizes = [1, 32], strides = [1, 1]} : vector<4x64xf32> to vector<1x32xf32>
    %c1 = arith.constant 1 : index
    %c0_7 = arith.constant 0 : index
    %9 = vector.load %arg16[%c1, %c0_7] : memref<8x32xf32, #tpu.memory_space<vmem>>, vector<1x32xf32>
    tpu.vector_store %arg16[%c1, %c0_7], %8 {strides = array<i32>} : memref<8x32xf32, #tpu.memory_space<vmem>>, vector<1x32xf32>,
    %10 = vector.extract_strided_slice %5 {offsets = [1, 0], sizes = [1, 32], strides = [1, 1]} : vector<4x64xf32> to vector<1x32xf32>
    %c2 = arith.constant 2 : index
    %c0_8 = arith.constant 0 : index
    %11 = vector.load %arg16[%c2, %c0_8] : memref<8x32xf32, #tpu.memory_space<vmem>>, vector<1x32xf32>
    tpu.vector_store %arg16[%c2, %c0_8], %10 {strides = array<i32>} : memref<8x32xf32, #tpu.memory_space<vmem>>, vector<1x32xf32>,
    %12 = vector.extract_strided_slice %5 {offsets = [1, 32], sizes = [1, 32], strides = [1, 1]} : vector<4x64xf32> to vector<1x32xf32>
    %c3 = arith.constant 3 : index
    %c0_9 = arith.constant 0 : index
    %13 = vector.load %arg16[%c3, %c0_9] : memref<8x32xf32, #tpu.memory_space<vmem>>, vector<1x32xf32>
    tpu.vector_store %arg16[%c3, %c0_9], %12 {strides = array<i32>} : memref<8x32xf32, #tpu.memory_space<vmem>>, vector<1x32xf32>,
    %14 = vector.extract_strided_slice %5 {offsets = [2, 0], sizes = [1, 32], strides = [1, 1]} : vector<4x64xf32> to vector<1x32xf32>
    %c4 = arith.constant 4 : index
    %c0_10 = arith.constant 0 : index
    %15 = vector.load %arg16[%c4, %c0_10] : memref<8x32xf32, #tpu.memory_space<vmem>>, vector<1x32xf32>
    tpu.vector_store %arg16[%c4, %c0_10], %14 {strides = array<i32>} : memref<8x32xf32, #tpu.memory_space<vmem>>, vector<1x32xf32>,
    %16 = vector.extract_strided_slice %5 {offsets = [2, 32], sizes = [1, 32], strides = [1, 1]} : vector<4x64xf32> to vector<1x32xf32>
    %c5 = arith.constant 5 : index
    %c0_11 = arith.constant 0 : index
    %17 = vector.load %arg16[%c5, %c0_11] : memref<8x32xf32, #tpu.memory_space<vmem>>, vector<1x32xf32>
    tpu.vector_store %arg16[%c5, %c0_11], %16 {strides = array<i32>} : memref<8x32xf32, #tpu.memory_space<vmem>>, vector<1x32xf32>,
    %18 = vector.extract_strided_slice %5 {offsets = [3, 0], sizes = [1, 32], strides = [1, 1]} : vector<4x64xf32> to vector<1x32xf32>
    %c6 = arith.constant 6 : index
    %c0_12 = arith.constant 0 : index
    %19 = vector.load %arg16[%c6, %c0_12] : memref<8x32xf32, #tpu.memory_space<vmem>>, vector<1x32xf32>
    tpu.vector_store %arg16[%c6, %c0_12], %18 {strides = array<i32>} : memref<8x32xf32, #tpu.memory_space<vmem>>, vector<1x32xf32>,
    %20 = vector.extract_strided_slice %5 {offsets = [3, 32], sizes = [1, 32], strides = [1, 1]} : vector<4x64xf32> to vector<1x32xf32>
    %c7 = arith.constant 7 : index
    %c0_13 = arith.constant 0 : index
    %21 = vector.load %arg16[%c7, %c0_13] : memref<8x32xf32, #tpu.memory_space<vmem>>, vector<1x32xf32>
    tpu.vector_store %arg16[%c7, %c0_13], %20 {strides = array<i32>} : memref<8x32xf32, #tpu.memory_space<vmem>>, vector<1x32xf32>,
    %c0_14 = arith.constant 0 : index
    %c0_15 = arith.constant 0 : index
    %22 = vector.load %arg16[%c0_14, %c0_15] : memref<8x32xf32, #tpu.memory_space<vmem>>, vector<4x32xf32>
    %c4_16 = arith.constant 4 : index
    %c0_17 = arith.constant 0 : index
    %23 = vector.load %arg16[%c4_16, %c0_17] : memref<8x32xf32, #tpu.memory_space<vmem>>, vector<4x32xf32>
    %c0_18 = arith.constant 0 : index
    %c0_19 = arith.constant 0 : index
    %24 = vector.load %arg1[%c0_18, %c0_19] : memref<32x16xf32, #tpu.memory_space<vmem>>, vector<32x16xf32>
    %c0_20 = arith.constant 0 : index
    %c0_21 = arith.constant 0 : index
    %25 = vector.load %arg4[%c0_20, %c0_21] : memref<16x96xf32, #tpu.memory_space<vmem>>, vector<16x96xf32>
    %cst_22 = arith.constant dense<0.000000e+00> : vector<32x96xf32>
    %26 = tpu.matmul %24, %25, %cst_22 {dimension_numbers = #tpu.dot_dimension_numbers<[1], [0], [0], [1], [0, 0, 1, 1], [], []>} : vector<32x16xf32>, vector<16x96xf32>, vector<32x96xf32> -> vector<32x96xf32>
    %c0_23 = arith.constant 0 : index
    %c0_24 = arith.constant 0 : index
    %27 = vector.load %arg6[%c0_23, %c0_24] : memref<1x96xf32, #tpu.memory_space<vmem>>, vector<1x96xf32>
    %28 = vector.broadcast %27 : vector<1x96xf32> to vector<32x96xf32>
    %29 = arith.addf %26, %28 : vector<32x96xf32>
    %c0_25 = arith.constant 0 : index
    %c0_26 = arith.constant 0 : index
    %30 = vector.load %arg8[%c0_25, %c0_26] : memref<16x96xf32, #tpu.memory_space<vmem>>, vector<16x96xf32>
    %cst_27 = arith.constant dense<0.000000e+00> : vector<32x96xf32>
    %31 = tpu.matmul %24, %30, %cst_27 {dimension_numbers = #tpu.dot_dimension_numbers<[1], [0], [0], [1], [0, 0, 1, 1], [], []>} : vector<32x16xf32>, vector<16x96xf32>, vector<32x96xf32> -> vector<32x96xf32>
    %c0_28 = arith.constant 0 : index
    %c0_29 = arith.constant 0 : index
    %32 = vector.load %arg10[%c0_28, %c0_29] : memref<1x96xf32, #tpu.memory_space<vmem>>, vector<1x96xf32>
    %33 = vector.broadcast %32 : vector<1x96xf32> to vector<32x96xf32>
    %34 = arith.addf %31, %33 : vector<32x96xf32>
    %c0_30 = arith.constant 0 : index
    %c0_31 = arith.constant 0 : index
    %35 = vector.load %arg5[%c0_30, %c0_31] : memref<32x96xf32, #tpu.memory_space<vmem>>, vector<32x96xf32>
    %c0_32 = arith.constant 0 : index
    %c0_33 = arith.constant 0 : index
    %36 = vector.load %arg9[%c0_32, %c0_33] : memref<32x96xf32, #tpu.memory_space<vmem>>, vector<32x96xf32>
    %c0_34 = arith.constant 0 : index
    %c0_35 = arith.constant 0 : index
    %37 = vector.load %arg7[%c0_34, %c0_35] : memref<1x32xf32, #tpu.memory_space<vmem>>, vector<1x32xf32>
    %c0_36 = arith.constant 0 : index
    %c0_37 = arith.constant 0 : index
    %38 = vector.load %arg11[%c0_36, %c0_37] : memref<1x32xf32, #tpu.memory_space<vmem>>, vector<1x32xf32>
    %39 = vector.extract_strided_slice %29 {offsets = [0, 0], sizes = [4, 96], strides = [1, 1]} : vector<32x96xf32> to vector<4x96xf32>
    %cst_38 = arith.constant dense<0.000000e+00> : vector<4x96xf32>
    %40 = tpu.matmul %22, %35, %cst_38 {dimension_numbers = #tpu.dot_dimension_numbers<[1], [0], [0], [1], [0, 0, 1, 1], [], []>} : vector<4x32xf32>, vector<32x96xf32>, vector<4x96xf32> -> vector<4x96xf32>
    %41 = vector.extract_strided_slice %39 {offsets = [0, 0], sizes = [4, 64], strides = [1, 1]} : vector<4x96xf32> to vector<4x64xf32>
    %42 = vector.extract_strided_slice %40 {offsets = [0, 0], sizes = [4, 64], strides = [1, 1]} : vector<4x96xf32> to vector<4x64xf32>
    %43 = arith.addf %41, %42 : vector<4x64xf32>
    %44 = arith.negf %43 : vector<4x64xf32>
    %45 = math.exp %44 : vector<4x64xf32>
    %cst_39 = arith.constant 1.000000e+00 : f32
    %46 = vector.broadcast %cst_39 : f32 to vector<4x64xf32>
    %47 = arith.addf %46, %45 : vector<4x64xf32>
    %48 = arith.divf %46, %47 : vector<4x64xf32>
    %49 = vector.extract_strided_slice %48 {offsets = [0, 0], sizes = [4, 32], strides = [1, 1]} : vector<4x64xf32> to vector<4x32xf32>
    %50 = vector.extract_strided_slice %48 {offsets = [0, 32], sizes = [4, 32], strides = [1, 1]} : vector<4x64xf32> to vector<4x32xf32>
    %51 = vector.extract_strided_slice %39 {offsets = [0, 64], sizes = [4, 32], strides = [1, 1]} : vector<4x96xf32> to vector<4x32xf32>
    %52 = vector.extract_strided_slice %40 {offsets = [0, 64], sizes = [4, 32], strides = [1, 1]} : vector<4x96xf32> to vector<4x32xf32>
    %53 = vector.broadcast %37 : vector<1x32xf32> to vector<4x32xf32>
    %54 = arith.addf %52, %53 : vector<4x32xf32>
    %55 = arith.mulf %49, %54 : vector<4x32xf32>
    %56 = arith.addf %51, %55 : vector<4x32xf32>
    %57 = math.tanh %56 : vector<4x32xf32>
    %cst_40 = arith.constant 1.000000e+00 : f32
    %58 = vector.broadcast %cst_40 : f32 to vector<4x32xf32>
    %59 = arith.subf %58, %50 : vector<4x32xf32>
    %60 = arith.mulf %59, %57 : vector<4x32xf32>
    %61 = arith.mulf %50, %22 : vector<4x32xf32>
    %62 = arith.addf %60, %61 : vector<4x32xf32>
    %c0_41 = arith.constant 0 : index
    %c0_42 = arith.constant 0 : index
    %63 = vector.load %arg17[%c0_41, %c0_42] : memref<32x32xf32, #tpu.memory_space<vmem>>, vector<4x32xf32>
    tpu.vector_store %arg17[%c0_41, %c0_42], %62 {strides = array<i32>} : memref<32x32xf32, #tpu.memory_space<vmem>>, vector<4x32xf32>,
    %64 = vector.extract_strided_slice %29 {offsets = [4, 0], sizes = [4, 96], strides = [1, 1]} : vector<32x96xf32> to vector<4x96xf32>
    %cst_43 = arith.constant dense<0.000000e+00> : vector<4x96xf32>
    %65 = tpu.matmul %62, %35, %cst_43 {dimension_numbers = #tpu.dot_dimension_numbers<[1], [0], [0], [1], [0, 0, 1, 1], [], []>} : vector<4x32xf32>, vector<32x96xf32>, vector<4x96xf32> -> vector<4x96xf32>
    %66 = vector.extract_strided_slice %64 {offsets = [0, 0], sizes = [4, 64], strides = [1, 1]} : vector<4x96xf32> to vector<4x64xf32>
    %67 = vector.extract_strided_slice %65 {offsets = [0, 0], sizes = [4, 64], strides = [1, 1]} : vector<4x96xf32> to vector<4x64xf32>
    %68 = arith.addf %66, %67 : vector<4x64xf32>
    %69 = arith.negf %68 : vector<4x64xf32>
    %70 = math.exp %69 : vector<4x64xf32>
    %cst_44 = arith.constant 1.000000e+00 : f32
    %71 = vector.broadcast %cst_44 : f32 to vector<4x64xf32>
    %72 = arith.addf %71, %70 : vector<4x64xf32>
    %73 = arith.divf %71, %72 : vector<4x64xf32>
    %74 = vector.extract_strided_slice %73 {offsets = [0, 0], sizes = [4, 32], strides = [1, 1]} : vector<4x64xf32> to vector<4x32xf32>
    %75 = vector.extract_strided_slice %73 {offsets = [0, 32], sizes = [4, 32], strides = [1, 1]} : vector<4x64xf32> to vector<4x32xf32>
    %76 = vector.extract_strided_slice %64 {offsets = [0, 64], sizes = [4, 32], strides = [1, 1]} : vector<4x96xf32> to vector<4x32xf32>
    %77 = vector.extract_strided_slice %65 {offsets = [0, 64], sizes = [4, 32], strides = [1, 1]} : vector<4x96xf32> to vector<4x32xf32>
    %78 = vector.broadcast %37 : vector<1x32xf32> to vector<4x32xf32>
    %79 = arith.addf %77, %78 : vector<4x32xf32>
    %80 = arith.mulf %74, %79 : vector<4x32xf32>
    %81 = arith.addf %76, %80 : vector<4x32xf32>
    %82 = math.tanh %81 : vector<4x32xf32>
    %cst_45 = arith.constant 1.000000e+00 : f32
    %83 = vector.broadcast %cst_45 : f32 to vector<4x32xf32>
    %84 = arith.subf %83, %75 : vector<4x32xf32>
    %85 = arith.mulf %84, %82 : vector<4x32xf32>
    %86 = arith.mulf %75, %62 : vector<4x32xf32>
    %87 = arith.addf %85, %86 : vector<4x32xf32>
    %c4_46 = arith.constant 4 : index
    %c0_47 = arith.constant 0 : index
    %88 = vector.load %arg17[%c4_46, %c0_47] : memref<32x32xf32, #tpu.memory_space<vmem>>, vector<4x32xf32>
    tpu.vector_store %arg17[%c4_46, %c0_47], %87 {strides = array<i32>} : memref<32x32xf32, #tpu.memory_space<vmem>>, vector<4x32xf32>,
    %89 = vector.extract_strided_slice %29 {offsets = [8, 0], sizes = [4, 96], strides = [1, 1]} : vector<32x96xf32> to vector<4x96xf32>
    %cst_48 = arith.constant dense<0.000000e+00> : vector<4x96xf32>
    %90 = tpu.matmul %87, %35, %cst_48 {dimension_numbers = #tpu.dot_dimension_numbers<[1], [0], [0], [1], [0, 0, 1, 1], [], []>} : vector<4x32xf32>, vector<32x96xf32>, vector<4x96xf32> -> vector<4x96xf32>
    %91 = vector.extract_strided_slice %89 {offsets = [0, 0], sizes = [4, 64], strides = [1, 1]} : vector<4x96xf32> to vector<4x64xf32>
    %92 = vector.extract_strided_slice %90 {offsets = [0, 0], sizes = [4, 64], strides = [1, 1]} : vector<4x96xf32> to vector<4x64xf32>
    %93 = arith.addf %91, %92 : vector<4x64xf32>
    %94 = arith.negf %93 : vector<4x64xf32>
    %95 = math.exp %94 : vector<4x64xf32>
    %cst_49 = arith.constant 1.000000e+00 : f32
    %96 = vector.broadcast %cst_49 : f32 to vector<4x64xf32>
    %97 = arith.addf %96, %95 : vector<4x64xf32>
    %98 = arith.divf %96, %97 : vector<4x64xf32>
    %99 = vector.extract_strided_slice %98 {offsets = [0, 0], sizes = [4, 32], strides = [1, 1]} : vector<4x64xf32> to vector<4x32xf32>
    %100 = vector.extract_strided_slice %98 {offsets = [0, 32], sizes = [4, 32], strides = [1, 1]} : vector<4x64xf32> to vector<4x32xf32>
    %101 = vector.extract_strided_slice %89 {offsets = [0, 64], sizes = [4, 32], strides = [1, 1]} : vector<4x96xf32> to vector<4x32xf32>
    %102 = vector.extract_strided_slice %90 {offsets = [0, 64], sizes = [4, 32], strides = [1, 1]} : vector<4x96xf32> to vector<4x32xf32>
    %103 = vector.broadcast %37 : vector<1x32xf32> to vector<4x32xf32>
    %104 = arith.addf %102, %103 : vector<4x32xf32>
    %105 = arith.mulf %99, %104 : vector<4x32xf32>
    %106 = arith.addf %101, %105 : vector<4x32xf32>
    %107 = math.tanh %106 : vector<4x32xf32>
    %cst_50 = arith.constant 1.000000e+00 : f32
    %108 = vector.broadcast %cst_50 : f32 to vector<4x32xf32>
    %109 = arith.subf %108, %100 : vector<4x32xf32>
    %110 = arith.mulf %109, %107 : vector<4x32xf32>
    %111 = arith.mulf %100, %87 : vector<4x32xf32>
    %112 = arith.addf %110, %111 : vector<4x32xf32>
    %c8 = arith.constant 8 : index
    %c0_51 = arith.constant 0 : index
    %113 = vector.load %arg17[%c8, %c0_51] : memref<32x32xf32, #tpu.memory_space<vmem>>, vector<4x32xf32>
    tpu.vector_store %arg17[%c8, %c0_51], %112 {strides = array<i32>} : memref<32x32xf32, #tpu.memory_space<vmem>>, vector<4x32xf32>,
    %114 = vector.extract_strided_slice %29 {offsets = [12, 0], sizes = [4, 96], strides = [1, 1]} : vector<32x96xf32> to vector<4x96xf32>
    %cst_52 = arith.constant dense<0.000000e+00> : vector<4x96xf32>
    %115 = tpu.matmul %112, %35, %cst_52 {dimension_numbers = #tpu.dot_dimension_numbers<[1], [0], [0], [1], [0, 0, 1, 1], [], []>} : vector<4x32xf32>, vector<32x96xf32>, vector<4x96xf32> -> vector<4x96xf32>
    %116 = vector.extract_strided_slice %114 {offsets = [0, 0], sizes = [4, 64], strides = [1, 1]} : vector<4x96xf32> to vector<4x64xf32>
    %117 = vector.extract_strided_slice %115 {offsets = [0, 0], sizes = [4, 64], strides = [1, 1]} : vector<4x96xf32> to vector<4x64xf32>
    %118 = arith.addf %116, %117 : vector<4x64xf32>
    %119 = arith.negf %118 : vector<4x64xf32>
    %120 = math.exp %119 : vector<4x64xf32>
    %cst_53 = arith.constant 1.000000e+00 : f32
    %121 = vector.broadcast %cst_53 : f32 to vector<4x64xf32>
    %122 = arith.addf %121, %120 : vector<4x64xf32>
    %123 = arith.divf %121, %122 : vector<4x64xf32>
    %124 = vector.extract_strided_slice %123 {offsets = [0, 0], sizes = [4, 32], strides = [1, 1]} : vector<4x64xf32> to vector<4x32xf32>
    %125 = vector.extract_strided_slice %123 {offsets = [0, 32], sizes = [4, 32], strides = [1, 1]} : vector<4x64xf32> to vector<4x32xf32>
    %126 = vector.extract_strided_slice %114 {offsets = [0, 64], sizes = [4, 32], strides = [1, 1]} : vector<4x96xf32> to vector<4x32xf32>
    %127 = vector.extract_strided_slice %115 {offsets = [0, 64], sizes = [4, 32], strides = [1, 1]} : vector<4x96xf32> to vector<4x32xf32>
    %128 = vector.broadcast %37 : vector<1x32xf32> to vector<4x32xf32>
    %129 = arith.addf %127, %128 : vector<4x32xf32>
    %130 = arith.mulf %124, %129 : vector<4x32xf32>
    %131 = arith.addf %126, %130 : vector<4x32xf32>
    %132 = math.tanh %131 : vector<4x32xf32>
    %cst_54 = arith.constant 1.000000e+00 : f32
    %133 = vector.broadcast %cst_54 : f32 to vector<4x32xf32>
    %134 = arith.subf %133, %125 : vector<4x32xf32>
    %135 = arith.mulf %134, %132 : vector<4x32xf32>
    %136 = arith.mulf %125, %112 : vector<4x32xf32>
    %137 = arith.addf %135, %136 : vector<4x32xf32>
    %c12 = arith.constant 12 : index
    %c0_55 = arith.constant 0 : index
    %138 = vector.load %arg17[%c12, %c0_55] : memref<32x32xf32, #tpu.memory_space<vmem>>, vector<4x32xf32>
    tpu.vector_store %arg17[%c12, %c0_55], %137 {strides = array<i32>} : memref<32x32xf32, #tpu.memory_space<vmem>>, vector<4x32xf32>,
    %139 = vector.extract_strided_slice %29 {offsets = [16, 0], sizes = [4, 96], strides = [1, 1]} : vector<32x96xf32> to vector<4x96xf32>
    %cst_56 = arith.constant dense<0.000000e+00> : vector<4x96xf32>
    %140 = tpu.matmul %137, %35, %cst_56 {dimension_numbers = #tpu.dot_dimension_numbers<[1], [0], [0], [1], [0, 0, 1, 1], [], []>} : vector<4x32xf32>, vector<32x96xf32>, vector<4x96xf32> -> vector<4x96xf32>
    %141 = vector.extract_strided_slice %139 {offsets = [0, 0], sizes = [4, 64], strides = [1, 1]} : vector<4x96xf32> to vector<4x64xf32>
    %142 = vector.extract_strided_slice %140 {offsets = [0, 0], sizes = [4, 64], strides = [1, 1]} : vector<4x96xf32> to vector<4x64xf32>
    %143 = arith.addf %141, %142 : vector<4x64xf32>
    %144 = arith.negf %143 : vector<4x64xf32>
    %145 = math.exp %144 : vector<4x64xf32>
    %cst_57 = arith.constant 1.000000e+00 : f32
    %146 = vector.broadcast %cst_57 : f32 to vector<4x64xf32>
    %147 = arith.addf %146, %145 : vector<4x64xf32>
    %148 = arith.divf %146, %147 : vector<4x64xf32>
    %149 = vector.extract_strided_slice %148 {offsets = [0, 0], sizes = [4, 32], strides = [1, 1]} : vector<4x64xf32> to vector<4x32xf32>
    %150 = vector.extract_strided_slice %148 {offsets = [0, 32], sizes = [4, 32], strides = [1, 1]} : vector<4x64xf32> to vector<4x32xf32>
    %151 = vector.extract_strided_slice %139 {offsets = [0, 64], sizes = [4, 32], strides = [1, 1]} : vector<4x96xf32> to vector<4x32xf32>
    %152 = vector.extract_strided_slice %140 {offsets = [0, 64], sizes = [4, 32], strides = [1, 1]} : vector<4x96xf32> to vector<4x32xf32>
    %153 = vector.broadcast %37 : vector<1x32xf32> to vector<4x32xf32>
    %154 = arith.addf %152, %153 : vector<4x32xf32>
    %155 = arith.mulf %149, %154 : vector<4x32xf32>
    %156 = arith.addf %151, %155 : vector<4x32xf32>
    %157 = math.tanh %156 : vector<4x32xf32>
    %cst_58 = arith.constant 1.000000e+00 : f32
    %158 = vector.broadcast %cst_58 : f32 to vector<4x32xf32>
    %159 = arith.subf %158, %150 : vector<4x32xf32>
    %160 = arith.mulf %159, %157 : vector<4x32xf32>
    %161 = arith.mulf %150, %137 : vector<4x32xf32>
    %162 = arith.addf %160, %161 : vector<4x32xf32>
    %c16 = arith.constant 16 : index
    %c0_59 = arith.constant 0 : index
    %163 = vector.load %arg17[%c16, %c0_59] : memref<32x32xf32, #tpu.memory_space<vmem>>, vector<4x32xf32>
    tpu.vector_store %arg17[%c16, %c0_59], %162 {strides = array<i32>} : memref<32x32xf32, #tpu.memory_space<vmem>>, vector<4x32xf32>,
    %164 = vector.extract_strided_slice %29 {offsets = [20, 0], sizes = [4, 96], strides = [1, 1]} : vector<32x96xf32> to vector<4x96xf32>
    %cst_60 = arith.constant dense<0.000000e+00> : vector<4x96xf32>
    %165 = tpu.matmul %162, %35, %cst_60 {dimension_numbers = #tpu.dot_dimension_numbers<[1], [0], [0], [1], [0, 0, 1, 1], [], []>} : vector<4x32xf32>, vector<32x96xf32>, vector<4x96xf32> -> vector<4x96xf32>
    %166 = vector.extract_strided_slice %164 {offsets = [0, 0], sizes = [4, 64], strides = [1, 1]} : vector<4x96xf32> to vector<4x64xf32>
    %167 = vector.extract_strided_slice %165 {offsets = [0, 0], sizes = [4, 64], strides = [1, 1]} : vector<4x96xf32> to vector<4x64xf32>
    %168 = arith.addf %166, %167 : vector<4x64xf32>
    %169 = arith.negf %168 : vector<4x64xf32>
    %170 = math.exp %169 : vector<4x64xf32>
    %cst_61 = arith.constant 1.000000e+00 : f32
    %171 = vector.broadcast %cst_61 : f32 to vector<4x64xf32>
    %172 = arith.addf %171, %170 : vector<4x64xf32>
    %173 = arith.divf %171, %172 : vector<4x64xf32>
    %174 = vector.extract_strided_slice %173 {offsets = [0, 0], sizes = [4, 32], strides = [1, 1]} : vector<4x64xf32> to vector<4x32xf32>
    %175 = vector.extract_strided_slice %173 {offsets = [0, 32], sizes = [4, 32], strides = [1, 1]} : vector<4x64xf32> to vector<4x32xf32>
    %176 = vector.extract_strided_slice %164 {offsets = [0, 64], sizes = [4, 32], strides = [1, 1]} : vector<4x96xf32> to vector<4x32xf32>
    %177 = vector.extract_strided_slice %165 {offsets = [0, 64], sizes = [4, 32], strides = [1, 1]} : vector<4x96xf32> to vector<4x32xf32>
    %178 = vector.broadcast %37 : vector<1x32xf32> to vector<4x32xf32>
    %179 = arith.addf %177, %178 : vector<4x32xf32>
    %180 = arith.mulf %174, %179 : vector<4x32xf32>
    %181 = arith.addf %176, %180 : vector<4x32xf32>
    %182 = math.tanh %181 : vector<4x32xf32>
    %cst_62 = arith.constant 1.000000e+00 : f32
    %183 = vector.broadcast %cst_62 : f32 to vector<4x32xf32>
    %184 = arith.subf %183, %175 : vector<4x32xf32>
    %185 = arith.mulf %184, %182 : vector<4x32xf32>
    %186 = arith.mulf %175, %162 : vector<4x32xf32>
    %187 = arith.addf %185, %186 : vector<4x32xf32>
    %c20 = arith.constant 20 : index
    %c0_63 = arith.constant 0 : index
    %188 = vector.load %arg17[%c20, %c0_63] : memref<32x32xf32, #tpu.memory_space<vmem>>, vector<4x32xf32>
    tpu.vector_store %arg17[%c20, %c0_63], %187 {strides = array<i32>} : memref<32x32xf32, #tpu.memory_space<vmem>>, vector<4x32xf32>,
    %189 = vector.extract_strided_slice %29 {offsets = [24, 0], sizes = [4, 96], strides = [1, 1]} : vector<32x96xf32> to vector<4x96xf32>
    %cst_64 = arith.constant dense<0.000000e+00> : vector<4x96xf32>
    %190 = tpu.matmul %187, %35, %cst_64 {dimension_numbers = #tpu.dot_dimension_numbers<[1], [0], [0], [1], [0, 0, 1, 1], [], []>} : vector<4x32xf32>, vector<32x96xf32>, vector<4x96xf32> -> vector<4x96xf32>
    %191 = vector.extract_strided_slice %189 {offsets = [0, 0], sizes = [4, 64], strides = [1, 1]} : vector<4x96xf32> to vector<4x64xf32>
    %192 = vector.extract_strided_slice %190 {offsets = [0, 0], sizes = [4, 64], strides = [1, 1]} : vector<4x96xf32> to vector<4x64xf32>
    %193 = arith.addf %191, %192 : vector<4x64xf32>
    %194 = arith.negf %193 : vector<4x64xf32>
    %195 = math.exp %194 : vector<4x64xf32>
    %cst_65 = arith.constant 1.000000e+00 : f32
    %196 = vector.broadcast %cst_65 : f32 to vector<4x64xf32>
    %197 = arith.addf %196, %195 : vector<4x64xf32>
    %198 = arith.divf %196, %197 : vector<4x64xf32>
    %199 = vector.extract_strided_slice %198 {offsets = [0, 0], sizes = [4, 32], strides = [1, 1]} : vector<4x64xf32> to vector<4x32xf32>
    %200 = vector.extract_strided_slice %198 {offsets = [0, 32], sizes = [4, 32], strides = [1, 1]} : vector<4x64xf32> to vector<4x32xf32>
    %201 = vector.extract_strided_slice %189 {offsets = [0, 64], sizes = [4, 32], strides = [1, 1]} : vector<4x96xf32> to vector<4x32xf32>
    %202 = vector.extract_strided_slice %190 {offsets = [0, 64], sizes = [4, 32], strides = [1, 1]} : vector<4x96xf32> to vector<4x32xf32>
    %203 = vector.broadcast %37 : vector<1x32xf32> to vector<4x32xf32>
    %204 = arith.addf %202, %203 : vector<4x32xf32>
    %205 = arith.mulf %199, %204 : vector<4x32xf32>
    %206 = arith.addf %201, %205 : vector<4x32xf32>
    %207 = math.tanh %206 : vector<4x32xf32>
    %cst_66 = arith.constant 1.000000e+00 : f32
    %208 = vector.broadcast %cst_66 : f32 to vector<4x32xf32>
    %209 = arith.subf %208, %200 : vector<4x32xf32>
    %210 = arith.mulf %209, %207 : vector<4x32xf32>
    %211 = arith.mulf %200, %187 : vector<4x32xf32>
    %212 = arith.addf %210, %211 : vector<4x32xf32>
    %c24 = arith.constant 24 : index
    %c0_67 = arith.constant 0 : index
    %213 = vector.load %arg17[%c24, %c0_67] : memref<32x32xf32, #tpu.memory_space<vmem>>, vector<4x32xf32>
    tpu.vector_store %arg17[%c24, %c0_67], %212 {strides = array<i32>} : memref<32x32xf32, #tpu.memory_space<vmem>>, vector<4x32xf32>,
    %214 = vector.extract_strided_slice %29 {offsets = [28, 0], sizes = [4, 96], strides = [1, 1]} : vector<32x96xf32> to vector<4x96xf32>
    %cst_68 = arith.constant dense<0.000000e+00> : vector<4x96xf32>
    %215 = tpu.matmul %212, %35, %cst_68 {dimension_numbers = #tpu.dot_dimension_numbers<[1], [0], [0], [1], [0, 0, 1, 1], [], []>} : vector<4x32xf32>, vector<32x96xf32>, vector<4x96xf32> -> vector<4x96xf32>
    %216 = vector.extract_strided_slice %214 {offsets = [0, 0], sizes = [4, 64], strides = [1, 1]} : vector<4x96xf32> to vector<4x64xf32>
    %217 = vector.extract_strided_slice %215 {offsets = [0, 0], sizes = [4, 64], strides = [1, 1]} : vector<4x96xf32> to vector<4x64xf32>
    %218 = arith.addf %216, %217 : vector<4x64xf32>
    %219 = arith.negf %218 : vector<4x64xf32>
    %220 = math.exp %219 : vector<4x64xf32>
    %cst_69 = arith.constant 1.000000e+00 : f32
    %221 = vector.broadcast %cst_69 : f32 to vector<4x64xf32>
    %222 = arith.addf %221, %220 : vector<4x64xf32>
    %223 = arith.divf %221, %222 : vector<4x64xf32>
    %224 = vector.extract_strided_slice %223 {offsets = [0, 0], sizes = [4, 32], strides = [1, 1]} : vector<4x64xf32> to vector<4x32xf32>
    %225 = vector.extract_strided_slice %223 {offsets = [0, 32], sizes = [4, 32], strides = [1, 1]} : vector<4x64xf32> to vector<4x32xf32>
    %226 = vector.extract_strided_slice %214 {offsets = [0, 64], sizes = [4, 32], strides = [1, 1]} : vector<4x96xf32> to vector<4x32xf32>
    %227 = vector.extract_strided_slice %215 {offsets = [0, 64], sizes = [4, 32], strides = [1, 1]} : vector<4x96xf32> to vector<4x32xf32>
    %228 = vector.broadcast %37 : vector<1x32xf32> to vector<4x32xf32>
    %229 = arith.addf %227, %228 : vector<4x32xf32>
    %230 = arith.mulf %224, %229 : vector<4x32xf32>
    %231 = arith.addf %226, %230 : vector<4x32xf32>
    %232 = math.tanh %231 : vector<4x32xf32>
    %cst_70 = arith.constant 1.000000e+00 : f32
    %233 = vector.broadcast %cst_70 : f32 to vector<4x32xf32>
    %234 = arith.subf %233, %225 : vector<4x32xf32>
    %235 = arith.mulf %234, %232 : vector<4x32xf32>
    %236 = arith.mulf %225, %212 : vector<4x32xf32>
    %237 = arith.addf %235, %236 : vector<4x32xf32>
    %c28 = arith.constant 28 : index
    %c0_71 = arith.constant 0 : index
    %238 = vector.load %arg17[%c28, %c0_71] : memref<32x32xf32, #tpu.memory_space<vmem>>, vector<4x32xf32>
    tpu.vector_store %arg17[%c28, %c0_71], %237 {strides = array<i32>} : memref<32x32xf32, #tpu.memory_space<vmem>>, vector<4x32xf32>,
    %239 = vector.extract_strided_slice %34 {offsets = [28, 0], sizes = [4, 96], strides = [1, 1]} : vector<32x96xf32> to vector<4x96xf32>
    %cst_72 = arith.constant dense<0.000000e+00> : vector<4x96xf32>
    %240 = tpu.matmul %23, %36, %cst_72 {dimension_numbers = #tpu.dot_dimension_numbers<[1], [0], [0], [1], [0, 0, 1, 1], [], []>} : vector<4x32xf32>, vector<32x96xf32>, vector<4x96xf32> -> vector<4x96xf32>
    %241 = vector.extract_strided_slice %239 {offsets = [0, 0], sizes = [4, 64], strides = [1, 1]} : vector<4x96xf32> to vector<4x64xf32>
    %242 = vector.extract_strided_slice %240 {offsets = [0, 0], sizes = [4, 64], strides = [1, 1]} : vector<4x96xf32> to vector<4x64xf32>
    %243 = arith.addf %241, %242 : vector<4x64xf32>
    %244 = arith.negf %243 : vector<4x64xf32>
    %245 = math.exp %244 : vector<4x64xf32>
    %cst_73 = arith.constant 1.000000e+00 : f32
    %246 = vector.broadcast %cst_73 : f32 to vector<4x64xf32>
    %247 = arith.addf %246, %245 : vector<4x64xf32>
    %248 = arith.divf %246, %247 : vector<4x64xf32>
    %249 = vector.extract_strided_slice %248 {offsets = [0, 0], sizes = [4, 32], strides = [1, 1]} : vector<4x64xf32> to vector<4x32xf32>
    %250 = vector.extract_strided_slice %248 {offsets = [0, 32], sizes = [4, 32], strides = [1, 1]} : vector<4x64xf32> to vector<4x32xf32>
    %251 = vector.extract_strided_slice %239 {offsets = [0, 64], sizes = [4, 32], strides = [1, 1]} : vector<4x96xf32> to vector<4x32xf32>
    %252 = vector.extract_strided_slice %240 {offsets = [0, 64], sizes = [4, 32], strides = [1, 1]} : vector<4x96xf32> to vector<4x32xf32>
    %253 = vector.broadcast %38 : vector<1x32xf32> to vector<4x32xf32>
    %254 = arith.addf %252, %253 : vector<4x32xf32>
    %255 = arith.mulf %249, %254 : vector<4x32xf32>
    %256 = arith.addf %251, %255 : vector<4x32xf32>
    %257 = math.tanh %256 : vector<4x32xf32>
    %cst_74 = arith.constant 1.000000e+00 : f32
    %258 = vector.broadcast %cst_74 : f32 to vector<4x32xf32>
    %259 = arith.subf %258, %250 : vector<4x32xf32>
    %260 = arith.mulf %259, %257 : vector<4x32xf32>
    %261 = arith.mulf %250, %23 : vector<4x32xf32>
    %262 = arith.addf %260, %261 : vector<4x32xf32>
    %c28_75 = arith.constant 28 : index
    %c0_76 = arith.constant 0 : index
    %263 = vector.load %arg18[%c28_75, %c0_76] : memref<32x32xf32, #tpu.memory_space<vmem>>, vector<4x32xf32>
    tpu.vector_store %arg18[%c28_75, %c0_76], %262 {strides = array<i32>} : memref<32x32xf32, #tpu.memory_space<vmem>>, vector<4x32xf32>,
    %264 = vector.extract_strided_slice %34 {offsets = [24, 0], sizes = [4, 96], strides = [1, 1]} : vector<32x96xf32> to vector<4x96xf32>
    %cst_77 = arith.constant dense<0.000000e+00> : vector<4x96xf32>
    %265 = tpu.matmul %262, %36, %cst_77 {dimension_numbers = #tpu.dot_dimension_numbers<[1], [0], [0], [1], [0, 0, 1, 1], [], []>} : vector<4x32xf32>, vector<32x96xf32>, vector<4x96xf32> -> vector<4x96xf32>
    %266 = vector.extract_strided_slice %264 {offsets = [0, 0], sizes = [4, 64], strides = [1, 1]} : vector<4x96xf32> to vector<4x64xf32>
    %267 = vector.extract_strided_slice %265 {offsets = [0, 0], sizes = [4, 64], strides = [1, 1]} : vector<4x96xf32> to vector<4x64xf32>
    %268 = arith.addf %266, %267 : vector<4x64xf32>
    %269 = arith.negf %268 : vector<4x64xf32>
    %270 = math.exp %269 : vector<4x64xf32>
    %cst_78 = arith.constant 1.000000e+00 : f32
    %271 = vector.broadcast %cst_78 : f32 to vector<4x64xf32>
    %272 = arith.addf %271, %270 : vector<4x64xf32>
    %273 = arith.divf %271, %272 : vector<4x64xf32>
    %274 = vector.extract_strided_slice %273 {offsets = [0, 0], sizes = [4, 32], strides = [1, 1]} : vector<4x64xf32> to vector<4x32xf32>
    %275 = vector.extract_strided_slice %273 {offsets = [0, 32], sizes = [4, 32], strides = [1, 1]} : vector<4x64xf32> to vector<4x32xf32>
    %276 = vector.extract_strided_slice %264 {offsets = [0, 64], sizes = [4, 32], strides = [1, 1]} : vector<4x96xf32> to vector<4x32xf32>
    %277 = vector.extract_strided_slice %265 {offsets = [0, 64], sizes = [4, 32], strides = [1, 1]} : vector<4x96xf32> to vector<4x32xf32>
    %278 = vector.broadcast %38 : vector<1x32xf32> to vector<4x32xf32>
    %279 = arith.addf %277, %278 : vector<4x32xf32>
    %280 = arith.mulf %274, %279 : vector<4x32xf32>
    %281 = arith.addf %276, %280 : vector<4x32xf32>
    %282 = math.tanh %281 : vector<4x32xf32>
    %cst_79 = arith.constant 1.000000e+00 : f32
    %283 = vector.broadcast %cst_79 : f32 to vector<4x32xf32>
    %284 = arith.subf %283, %275 : vector<4x32xf32>
    %285 = arith.mulf %284, %282 : vector<4x32xf32>
    %286 = arith.mulf %275, %262 : vector<4x32xf32>
    %287 = arith.addf %285, %286 : vector<4x32xf32>
    %c24_80 = arith.constant 24 : index
    %c0_81 = arith.constant 0 : index
    %288 = vector.load %arg18[%c24_80, %c0_81] : memref<32x32xf32, #tpu.memory_space<vmem>>, vector<4x32xf32>
    tpu.vector_store %arg18[%c24_80, %c0_81], %287 {strides = array<i32>} : memref<32x32xf32, #tpu.memory_space<vmem>>, vector<4x32xf32>,
    %289 = vector.extract_strided_slice %34 {offsets = [20, 0], sizes = [4, 96], strides = [1, 1]} : vector<32x96xf32> to vector<4x96xf32>
    %cst_82 = arith.constant dense<0.000000e+00> : vector<4x96xf32>
    %290 = tpu.matmul %287, %36, %cst_82 {dimension_numbers = #tpu.dot_dimension_numbers<[1], [0], [0], [1], [0, 0, 1, 1], [], []>} : vector<4x32xf32>, vector<32x96xf32>, vector<4x96xf32> -> vector<4x96xf32>
    %291 = vector.extract_strided_slice %289 {offsets = [0, 0], sizes = [4, 64], strides = [1, 1]} : vector<4x96xf32> to vector<4x64xf32>
    %292 = vector.extract_strided_slice %290 {offsets = [0, 0], sizes = [4, 64], strides = [1, 1]} : vector<4x96xf32> to vector<4x64xf32>
    %293 = arith.addf %291, %292 : vector<4x64xf32>
    %294 = arith.negf %293 : vector<4x64xf32>
    %295 = math.exp %294 : vector<4x64xf32>
    %cst_83 = arith.constant 1.000000e+00 : f32
    %296 = vector.broadcast %cst_83 : f32 to vector<4x64xf32>
    %297 = arith.addf %296, %295 : vector<4x64xf32>
    %298 = arith.divf %296, %297 : vector<4x64xf32>
    %299 = vector.extract_strided_slice %298 {offsets = [0, 0], sizes = [4, 32], strides = [1, 1]} : vector<4x64xf32> to vector<4x32xf32>
    %300 = vector.extract_strided_slice %298 {offsets = [0, 32], sizes = [4, 32], strides = [1, 1]} : vector<4x64xf32> to vector<4x32xf32>
    %301 = vector.extract_strided_slice %289 {offsets = [0, 64], sizes = [4, 32], strides = [1, 1]} : vector<4x96xf32> to vector<4x32xf32>
    %302 = vector.extract_strided_slice %290 {offsets = [0, 64], sizes = [4, 32], strides = [1, 1]} : vector<4x96xf32> to vector<4x32xf32>
    %303 = vector.broadcast %38 : vector<1x32xf32> to vector<4x32xf32>
    %304 = arith.addf %302, %303 : vector<4x32xf32>
    %305 = arith.mulf %299, %304 : vector<4x32xf32>
    %306 = arith.addf %301, %305 : vector<4x32xf32>
    %307 = math.tanh %306 : vector<4x32xf32>
    %cst_84 = arith.constant 1.000000e+00 : f32
    %308 = vector.broadcast %cst_84 : f32 to vector<4x32xf32>
    %309 = arith.subf %308, %300 : vector<4x32xf32>
    %310 = arith.mulf %309, %307 : vector<4x32xf32>
    %311 = arith.mulf %300, %287 : vector<4x32xf32>
    %312 = arith.addf %310, %311 : vector<4x32xf32>
    %c20_85 = arith.constant 20 : index
    %c0_86 = arith.constant 0 : index
    %313 = vector.load %arg18[%c20_85, %c0_86] : memref<32x32xf32, #tpu.memory_space<vmem>>, vector<4x32xf32>
    tpu.vector_store %arg18[%c20_85, %c0_86], %312 {strides = array<i32>} : memref<32x32xf32, #tpu.memory_space<vmem>>, vector<4x32xf32>,
    %314 = vector.extract_strided_slice %34 {offsets = [16, 0], sizes = [4, 96], strides = [1, 1]} : vector<32x96xf32> to vector<4x96xf32>
    %cst_87 = arith.constant dense<0.000000e+00> : vector<4x96xf32>
    %315 = tpu.matmul %312, %36, %cst_87 {dimension_numbers = #tpu.dot_dimension_numbers<[1], [0], [0], [1], [0, 0, 1, 1], [], []>} : vector<4x32xf32>, vector<32x96xf32>, vector<4x96xf32> -> vector<4x96xf32>
    %316 = vector.extract_strided_slice %314 {offsets = [0, 0], sizes = [4, 64], strides = [1, 1]} : vector<4x96xf32> to vector<4x64xf32>
    %317 = vector.extract_strided_slice %315 {offsets = [0, 0], sizes = [4, 64], strides = [1, 1]} : vector<4x96xf32> to vector<4x64xf32>
    %318 = arith.addf %316, %317 : vector<4x64xf32>
    %319 = arith.negf %318 : vector<4x64xf32>
    %320 = math.exp %319 : vector<4x64xf32>
    %cst_88 = arith.constant 1.000000e+00 : f32
    %321 = vector.broadcast %cst_88 : f32 to vector<4x64xf32>
    %322 = arith.addf %321, %320 : vector<4x64xf32>
    %323 = arith.divf %321, %322 : vector<4x64xf32>
    %324 = vector.extract_strided_slice %323 {offsets = [0, 0], sizes = [4, 32], strides = [1, 1]} : vector<4x64xf32> to vector<4x32xf32>
    %325 = vector.extract_strided_slice %323 {offsets = [0, 32], sizes = [4, 32], strides = [1, 1]} : vector<4x64xf32> to vector<4x32xf32>
    %326 = vector.extract_strided_slice %314 {offsets = [0, 64], sizes = [4, 32], strides = [1, 1]} : vector<4x96xf32> to vector<4x32xf32>
    %327 = vector.extract_strided_slice %315 {offsets = [0, 64], sizes = [4, 32], strides = [1, 1]} : vector<4x96xf32> to vector<4x32xf32>
    %328 = vector.broadcast %38 : vector<1x32xf32> to vector<4x32xf32>
    %329 = arith.addf %327, %328 : vector<4x32xf32>
    %330 = arith.mulf %324, %329 : vector<4x32xf32>
    %331 = arith.addf %326, %330 : vector<4x32xf32>
    %332 = math.tanh %331 : vector<4x32xf32>
    %cst_89 = arith.constant 1.000000e+00 : f32
    %333 = vector.broadcast %cst_89 : f32 to vector<4x32xf32>
    %334 = arith.subf %333, %325 : vector<4x32xf32>
    %335 = arith.mulf %334, %332 : vector<4x32xf32>
    %336 = arith.mulf %325, %312 : vector<4x32xf32>
    %337 = arith.addf %335, %336 : vector<4x32xf32>
    %c16_90 = arith.constant 16 : index
    %c0_91 = arith.constant 0 : index
    %338 = vector.load %arg18[%c16_90, %c0_91] : memref<32x32xf32, #tpu.memory_space<vmem>>, vector<4x32xf32>
    tpu.vector_store %arg18[%c16_90, %c0_91], %337 {strides = array<i32>} : memref<32x32xf32, #tpu.memory_space<vmem>>, vector<4x32xf32>,
    %339 = vector.extract_strided_slice %34 {offsets = [12, 0], sizes = [4, 96], strides = [1, 1]} : vector<32x96xf32> to vector<4x96xf32>
    %cst_92 = arith.constant dense<0.000000e+00> : vector<4x96xf32>
    %340 = tpu.matmul %337, %36, %cst_92 {dimension_numbers = #tpu.dot_dimension_numbers<[1], [0], [0], [1], [0, 0, 1, 1], [], []>} : vector<4x32xf32>, vector<32x96xf32>, vector<4x96xf32> -> vector<4x96xf32>
    %341 = vector.extract_strided_slice %339 {offsets = [0, 0], sizes = [4, 64], strides = [1, 1]} : vector<4x96xf32> to vector<4x64xf32>
    %342 = vector.extract_strided_slice %340 {offsets = [0, 0], sizes = [4, 64], strides = [1, 1]} : vector<4x96xf32> to vector<4x64xf32>
    %343 = arith.addf %341, %342 : vector<4x64xf32>
    %344 = arith.negf %343 : vector<4x64xf32>
    %345 = math.exp %344 : vector<4x64xf32>
    %cst_93 = arith.constant 1.000000e+00 : f32
    %346 = vector.broadcast %cst_93 : f32 to vector<4x64xf32>
    %347 = arith.addf %346, %345 : vector<4x64xf32>
    %348 = arith.divf %346, %347 : vector<4x64xf32>
    %349 = vector.extract_strided_slice %348 {offsets = [0, 0], sizes = [4, 32], strides = [1, 1]} : vector<4x64xf32> to vector<4x32xf32>
    %350 = vector.extract_strided_slice %348 {offsets = [0, 32], sizes = [4, 32], strides = [1, 1]} : vector<4x64xf32> to vector<4x32xf32>
    %351 = vector.extract_strided_slice %339 {offsets = [0, 64], sizes = [4, 32], strides = [1, 1]} : vector<4x96xf32> to vector<4x32xf32>
    %352 = vector.extract_strided_slice %340 {offsets = [0, 64], sizes = [4, 32], strides = [1, 1]} : vector<4x96xf32> to vector<4x32xf32>
    %353 = vector.broadcast %38 : vector<1x32xf32> to vector<4x32xf32>
    %354 = arith.addf %352, %353 : vector<4x32xf32>
    %355 = arith.mulf %349, %354 : vector<4x32xf32>
    %356 = arith.addf %351, %355 : vector<4x32xf32>
    %357 = math.tanh %356 : vector<4x32xf32>
    %cst_94 = arith.constant 1.000000e+00 : f32
    %358 = vector.broadcast %cst_94 : f32 to vector<4x32xf32>
    %359 = arith.subf %358, %350 : vector<4x32xf32>
    %360 = arith.mulf %359, %357 : vector<4x32xf32>
    %361 = arith.mulf %350, %337 : vector<4x32xf32>
    %362 = arith.addf %360, %361 : vector<4x32xf32>
    %c12_95 = arith.constant 12 : index
    %c0_96 = arith.constant 0 : index
    %363 = vector.load %arg18[%c12_95, %c0_96] : memref<32x32xf32, #tpu.memory_space<vmem>>, vector<4x32xf32>
    tpu.vector_store %arg18[%c12_95, %c0_96], %362 {strides = array<i32>} : memref<32x32xf32, #tpu.memory_space<vmem>>, vector<4x32xf32>,
    %364 = vector.extract_strided_slice %34 {offsets = [8, 0], sizes = [4, 96], strides = [1, 1]} : vector<32x96xf32> to vector<4x96xf32>
    %cst_97 = arith.constant dense<0.000000e+00> : vector<4x96xf32>
    %365 = tpu.matmul %362, %36, %cst_97 {dimension_numbers = #tpu.dot_dimension_numbers<[1], [0], [0], [1], [0, 0, 1, 1], [], []>} : vector<4x32xf32>, vector<32x96xf32>, vector<4x96xf32> -> vector<4x96xf32>
    %366 = vector.extract_strided_slice %364 {offsets = [0, 0], sizes = [4, 64], strides = [1, 1]} : vector<4x96xf32> to vector<4x64xf32>
    %367 = vector.extract_strided_slice %365 {offsets = [0, 0], sizes = [4, 64], strides = [1, 1]} : vector<4x96xf32> to vector<4x64xf32>
    %368 = arith.addf %366, %367 : vector<4x64xf32>
    %369 = arith.negf %368 : vector<4x64xf32>
    %370 = math.exp %369 : vector<4x64xf32>
    %cst_98 = arith.constant 1.000000e+00 : f32
    %371 = vector.broadcast %cst_98 : f32 to vector<4x64xf32>
    %372 = arith.addf %371, %370 : vector<4x64xf32>
    %373 = arith.divf %371, %372 : vector<4x64xf32>
    %374 = vector.extract_strided_slice %373 {offsets = [0, 0], sizes = [4, 32], strides = [1, 1]} : vector<4x64xf32> to vector<4x32xf32>
    %375 = vector.extract_strided_slice %373 {offsets = [0, 32], sizes = [4, 32], strides = [1, 1]} : vector<4x64xf32> to vector<4x32xf32>
    %376 = vector.extract_strided_slice %364 {offsets = [0, 64], sizes = [4, 32], strides = [1, 1]} : vector<4x96xf32> to vector<4x32xf32>
    %377 = vector.extract_strided_slice %365 {offsets = [0, 64], sizes = [4, 32], strides = [1, 1]} : vector<4x96xf32> to vector<4x32xf32>
    %378 = vector.broadcast %38 : vector<1x32xf32> to vector<4x32xf32>
    %379 = arith.addf %377, %378 : vector<4x32xf32>
    %380 = arith.mulf %374, %379 : vector<4x32xf32>
    %381 = arith.addf %376, %380 : vector<4x32xf32>
    %382 = math.tanh %381 : vector<4x32xf32>
    %cst_99 = arith.constant 1.000000e+00 : f32
    %383 = vector.broadcast %cst_99 : f32 to vector<4x32xf32>
    %384 = arith.subf %383, %375 : vector<4x32xf32>
    %385 = arith.mulf %384, %382 : vector<4x32xf32>
    %386 = arith.mulf %375, %362 : vector<4x32xf32>
    %387 = arith.addf %385, %386 : vector<4x32xf32>
    %c8_100 = arith.constant 8 : index
    %c0_101 = arith.constant 0 : index
    %388 = vector.load %arg18[%c8_100, %c0_101] : memref<32x32xf32, #tpu.memory_space<vmem>>, vector<4x32xf32>
    tpu.vector_store %arg18[%c8_100, %c0_101], %387 {strides = array<i32>} : memref<32x32xf32, #tpu.memory_space<vmem>>, vector<4x32xf32>,
    %389 = vector.extract_strided_slice %34 {offsets = [4, 0], sizes = [4, 96], strides = [1, 1]} : vector<32x96xf32> to vector<4x96xf32>
    %cst_102 = arith.constant dense<0.000000e+00> : vector<4x96xf32>
    %390 = tpu.matmul %387, %36, %cst_102 {dimension_numbers = #tpu.dot_dimension_numbers<[1], [0], [0], [1], [0, 0, 1, 1], [], []>} : vector<4x32xf32>, vector<32x96xf32>, vector<4x96xf32> -> vector<4x96xf32>
    %391 = vector.extract_strided_slice %389 {offsets = [0, 0], sizes = [4, 64], strides = [1, 1]} : vector<4x96xf32> to vector<4x64xf32>
    %392 = vector.extract_strided_slice %390 {offsets = [0, 0], sizes = [4, 64], strides = [1, 1]} : vector<4x96xf32> to vector<4x64xf32>
    %393 = arith.addf %391, %392 : vector<4x64xf32>
    %394 = arith.negf %393 : vector<4x64xf32>
    %395 = math.exp %394 : vector<4x64xf32>
    %cst_103 = arith.constant 1.000000e+00 : f32
    %396 = vector.broadcast %cst_103 : f32 to vector<4x64xf32>
    %397 = arith.addf %396, %395 : vector<4x64xf32>
    %398 = arith.divf %396, %397 : vector<4x64xf32>
    %399 = vector.extract_strided_slice %398 {offsets = [0, 0], sizes = [4, 32], strides = [1, 1]} : vector<4x64xf32> to vector<4x32xf32>
    %400 = vector.extract_strided_slice %398 {offsets = [0, 32], sizes = [4, 32], strides = [1, 1]} : vector<4x64xf32> to vector<4x32xf32>
    %401 = vector.extract_strided_slice %389 {offsets = [0, 64], sizes = [4, 32], strides = [1, 1]} : vector<4x96xf32> to vector<4x32xf32>
    %402 = vector.extract_strided_slice %390 {offsets = [0, 64], sizes = [4, 32], strides = [1, 1]} : vector<4x96xf32> to vector<4x32xf32>
    %403 = vector.broadcast %38 : vector<1x32xf32> to vector<4x32xf32>
    %404 = arith.addf %402, %403 : vector<4x32xf32>
    %405 = arith.mulf %399, %404 : vector<4x32xf32>
    %406 = arith.addf %401, %405 : vector<4x32xf32>
    %407 = math.tanh %406 : vector<4x32xf32>
    %cst_104 = arith.constant 1.000000e+00 : f32
    %408 = vector.broadcast %cst_104 : f32 to vector<4x32xf32>
    %409 = arith.subf %408, %400 : vector<4x32xf32>
    %410 = arith.mulf %409, %407 : vector<4x32xf32>
    %411 = arith.mulf %400, %387 : vector<4x32xf32>
    %412 = arith.addf %410, %411 : vector<4x32xf32>
    %c4_105 = arith.constant 4 : index
    %c0_106 = arith.constant 0 : index
    %413 = vector.load %arg18[%c4_105, %c0_106] : memref<32x32xf32, #tpu.memory_space<vmem>>, vector<4x32xf32>
    tpu.vector_store %arg18[%c4_105, %c0_106], %412 {strides = array<i32>} : memref<32x32xf32, #tpu.memory_space<vmem>>, vector<4x32xf32>,
    %414 = vector.extract_strided_slice %34 {offsets = [0, 0], sizes = [4, 96], strides = [1, 1]} : vector<32x96xf32> to vector<4x96xf32>
    %cst_107 = arith.constant dense<0.000000e+00> : vector<4x96xf32>
    %415 = tpu.matmul %412, %36, %cst_107 {dimension_numbers = #tpu.dot_dimension_numbers<[1], [0], [0], [1], [0, 0, 1, 1], [], []>} : vector<4x32xf32>, vector<32x96xf32>, vector<4x96xf32> -> vector<4x96xf32>
    %416 = vector.extract_strided_slice %414 {offsets = [0, 0], sizes = [4, 64], strides = [1, 1]} : vector<4x96xf32> to vector<4x64xf32>
    %417 = vector.extract_strided_slice %415 {offsets = [0, 0], sizes = [4, 64], strides = [1, 1]} : vector<4x96xf32> to vector<4x64xf32>
    %418 = arith.addf %416, %417 : vector<4x64xf32>
    %419 = arith.negf %418 : vector<4x64xf32>
    %420 = math.exp %419 : vector<4x64xf32>
    %cst_108 = arith.constant 1.000000e+00 : f32
    %421 = vector.broadcast %cst_108 : f32 to vector<4x64xf32>
    %422 = arith.addf %421, %420 : vector<4x64xf32>
    %423 = arith.divf %421, %422 : vector<4x64xf32>
    %424 = vector.extract_strided_slice %423 {offsets = [0, 0], sizes = [4, 32], strides = [1, 1]} : vector<4x64xf32> to vector<4x32xf32>
    %425 = vector.extract_strided_slice %423 {offsets = [0, 32], sizes = [4, 32], strides = [1, 1]} : vector<4x64xf32> to vector<4x32xf32>
    %426 = vector.extract_strided_slice %414 {offsets = [0, 64], sizes = [4, 32], strides = [1, 1]} : vector<4x96xf32> to vector<4x32xf32>
    %427 = vector.extract_strided_slice %415 {offsets = [0, 64], sizes = [4, 32], strides = [1, 1]} : vector<4x96xf32> to vector<4x32xf32>
    %428 = vector.broadcast %38 : vector<1x32xf32> to vector<4x32xf32>
    %429 = arith.addf %427, %428 : vector<4x32xf32>
    %430 = arith.mulf %424, %429 : vector<4x32xf32>
    %431 = arith.addf %426, %430 : vector<4x32xf32>
    %432 = math.tanh %431 : vector<4x32xf32>
    %cst_109 = arith.constant 1.000000e+00 : f32
    %433 = vector.broadcast %cst_109 : f32 to vector<4x32xf32>
    %434 = arith.subf %433, %425 : vector<4x32xf32>
    %435 = arith.mulf %434, %432 : vector<4x32xf32>
    %436 = arith.mulf %425, %412 : vector<4x32xf32>
    %437 = arith.addf %435, %436 : vector<4x32xf32>
    %c0_110 = arith.constant 0 : index
    %c0_111 = arith.constant 0 : index
    %438 = vector.load %arg18[%c0_110, %c0_111] : memref<32x32xf32, #tpu.memory_space<vmem>>, vector<4x32xf32>
    tpu.vector_store %arg18[%c0_110, %c0_111], %437 {strides = array<i32>} : memref<32x32xf32, #tpu.memory_space<vmem>>, vector<4x32xf32>,
    %c0_112 = arith.constant 0 : index
    %c0_113 = arith.constant 0 : index
    %439 = vector.load %arg17[%c0_112, %c0_113] : memref<32x32xf32, #tpu.memory_space<vmem>>, vector<32x32xf32>
    %c0_114 = arith.constant 0 : index
    %c0_115 = arith.constant 0 : index
    %440 = vector.load %arg12[%c0_114, %c0_115] : memref<32x12xf32, #tpu.memory_space<vmem>>, vector<32x12xf32>
    %cst_116 = arith.constant dense<0.000000e+00> : vector<32x12xf32>
    %441 = tpu.matmul %439, %440, %cst_116 {dimension_numbers = #tpu.dot_dimension_numbers<[1], [0], [0], [1], [0, 0, 1, 1], [], []>} : vector<32x32xf32>, vector<32x12xf32>, vector<32x12xf32> -> vector<32x12xf32>
    %c0_117 = arith.constant 0 : index
    %c0_118 = arith.constant 0 : index
    %442 = vector.load %arg18[%c0_117, %c0_118] : memref<32x32xf32, #tpu.memory_space<vmem>>, vector<32x32xf32>
    %c0_119 = arith.constant 0 : index
    %c0_120 = arith.constant 0 : index
    %443 = vector.load %arg13[%c0_119, %c0_120] : memref<32x12xf32, #tpu.memory_space<vmem>>, vector<32x12xf32>
    %cst_121 = arith.constant dense<0.000000e+00> : vector<32x12xf32>
    %444 = tpu.matmul %442, %443, %cst_121 {dimension_numbers = #tpu.dot_dimension_numbers<[1], [0], [0], [1], [0, 0, 1, 1], [], []>} : vector<32x32xf32>, vector<32x12xf32>, vector<32x12xf32> -> vector<32x12xf32>
    %445 = arith.addf %441, %444 : vector<32x12xf32>
    %c0_122 = arith.constant 0 : index
    %c0_123 = arith.constant 0 : index
    %446 = vector.load %arg14[%c0_122, %c0_123] : memref<1x12xf32, #tpu.memory_space<vmem>>, vector<1x12xf32>
    %447 = vector.broadcast %446 : vector<1x12xf32> to vector<32x12xf32>
    %448 = arith.addf %445, %447 : vector<32x12xf32>
    %c0_124 = arith.constant 0 : index
    %c0_125 = arith.constant 0 : index
    %449 = vector.load %arg15[%c0_124, %c0_125] : memref<32x12xf32, #tpu.memory_space<vmem>>, vector<32x12xf32>
    tpu.vector_store %arg15[%c0_124, %c0_125], %448 {strides = array<i32>} : memref<32x12xf32, #tpu.memory_space<vmem>>, vector<32x12xf32>,
    return
  }
}

</mosaic_0001>

<llo_original>
// kernel: decoder_future_forward.1
$region0: #{decoder_future_forward.1}
  #allocation0 [shape = 'u32[]', space=smem, size = 0x4, offset = 0x4, fixed_abs, tag = 'smem constant byte address 0x4 - core index']
  #allocation1 [shape = 'u32[72,128]{1,0:T(1,128)}', space=vmem, size = 0x9000, scoped, tag = 'internal scratch']
  #allocation2 [shape = 'f32[8,32]{1,0:T(8,128)}', space=vmem, size = 0x1000, scoped, tag = 'scratch operand']
  #allocation3 [shape = 'f32[32,32]{1,0:T(8,128)}', space=vmem, size = 0x4000, scoped, tag = 'scratch operand']
  #allocation4 [shape = 'f32[32,32]{1,0:T(8,128)}', space=vmem, size = 0x4000, scoped, tag = 'scratch operand']
  %s0 = inlined_call_operand.vmem [shape: f32[4,16], index: 0, kind: input, shape index: {}]
  %s1 = inlined_call_operand.vmem [shape: f32[32,16], index: 1, kind: input, shape index: {}]
  %s2 = inlined_call_operand.vmem [shape: f32[16,64], index: 2, kind: input, shape index: {}]
  %s3 = inlined_call_operand.vmem [shape: f32[1,64], index: 3, kind: input, shape index: {}]
  %s4 = inlined_call_operand.vmem [shape: f32[16,96], index: 4, kind: input, shape index: {}]
  %s5 = inlined_call_operand.vmem [shape: f32[32,96], index: 5, kind: input, shape index: {}]
  %s6 = inlined_call_operand.vmem [shape: f32[1,96], index: 6, kind: input, shape index: {}]
  %s7 = inlined_call_operand.vmem [shape: f32[1,32], index: 7, kind: input, shape index: {}]
  %s8 = inlined_call_operand.vmem [shape: f32[16,96], index: 8, kind: input, shape index: {}]
  %s9 = inlined_call_operand.vmem [shape: f32[32,96], index: 9, kind: input, shape index: {}]
  %s10 = inlined_call_operand.vmem [shape: f32[1,96], index: 10, kind: input, shape index: {}]
  %s11 = inlined_call_operand.vmem [shape: f32[1,32], index: 11, kind: input, shape index: {}]
  %s12 = inlined_call_operand.vmem [shape: f32[32,12], index: 12, kind: input, shape index: {}]
  %s13 = inlined_call_operand.vmem [shape: f32[32,12], index: 13, kind: input, shape index: {}]
  %s14 = inlined_call_operand.vmem [shape: f32[1,12], index: 14, kind: input, shape index: {}]
  %s15 = inlined_call_operand.vmem [shape: f32[32,12], index: 15, kind: output, shape index: {}]
  %s16 = sld [smem:[#allocation0]]
  $region70: #{decoder_future_forward.1} parent=0
    _
  %s18 = ssub.s32 1, %s16
  %s19 = scalar_select 0, %s18, %s16
  // Predicated region
  $region2: #{decoder_future_forward.1} parent=0 // pred_check
    _
  $region3: #{decoder_future_forward.1} parent=0 // pred_check_branch
    %21 = sbr.rel (0) target = $region5
  $region4: #{decoder_future_forward.1} parent=0 // pred_region
    _
  $region5: #{decoder_future_forward.1} parent=0 // pred_fallthru
    _
  // Predicated region
  $region6: #{decoder_future_forward.1} parent=0 // pred_check
    _
  $region7: #{decoder_future_forward.1} parent=0 // pred_check_branch
    %23 = sbr.rel (0) target = $region9
  $region8: #{decoder_future_forward.1} parent=0 // pred_region
    _
  $region9: #{decoder_future_forward.1} parent=0 // pred_fallthru
    _
  // Predicated region
  $region10: #{decoder_future_forward.1} parent=0 // pred_check
    _
  $region11: #{decoder_future_forward.1} parent=0 // pred_check_branch
    %25 = sbr.rel (0) target = $region13
  $region12: #{decoder_future_forward.1} parent=0 // pred_region
    _
  $region13: #{decoder_future_forward.1} parent=0 // pred_fallthru
    _
  // Predicated region
  $region14: #{decoder_future_forward.1} parent=0 // pred_check
    _
  $region15: #{decoder_future_forward.1} parent=0 // pred_check_branch
    %27 = sbr.rel (0) target = $region17
  $region16: #{decoder_future_forward.1} parent=0 // pred_region
    _
  $region17: #{decoder_future_forward.1} parent=0 // pred_fallthru
    _
  // Predicated region
  $region18: #{decoder_future_forward.1} parent=0 // pred_check
    _
  $region19: #{decoder_future_forward.1} parent=0 // pred_check_branch
    %29 = sbr.rel (0) target = $region21
  $region20: #{decoder_future_forward.1} parent=0 // pred_region
    _
  $region21: #{decoder_future_forward.1} parent=0 // pred_fallthru
    _
  // Predicated region
  $region22: #{decoder_future_forward.1} parent=0 // pred_check
    _
  $region23: #{decoder_future_forward.1} parent=0 // pred_check_branch
    %31 = sbr.rel (0) target = $region25
  $region24: #{decoder_future_forward.1} parent=0 // pred_region
    _
  $region25: #{decoder_future_forward.1} parent=0 // pred_fallthru
    _
  // Predicated region
  $region26: #{decoder_future_forward.1} parent=0 // pred_check
    _
  $region27: #{decoder_future_forward.1} parent=0 // pred_check_branch
    %33 = sbr.rel (0) target = $region29
  $region28: #{decoder_future_forward.1} parent=0 // pred_region
    _
  $region29: #{decoder_future_forward.1} parent=0 // pred_fallthru
    _
  // Predicated region
  $region30: #{decoder_future_forward.1} parent=0 // pred_check
    _
  $region31: #{decoder_future_forward.1} parent=0 // pred_check_branch
    %35 = sbr.rel (0) target = $region33
  $region32: #{decoder_future_forward.1} parent=0 // pred_region
    _
  $region33: #{decoder_future_forward.1} parent=0 // pred_fallthru
    _
  // Predicated region
  $region34: #{decoder_future_forward.1} parent=0 // pred_check
    _
  $region35: #{decoder_future_forward.1} parent=0 // pred_check_branch
    %37 = sbr.rel (0) target = $region37
  $region36: #{decoder_future_forward.1} parent=0 // pred_region
    _
  $region37: #{decoder_future_forward.1} parent=0 // pred_fallthru
    _
  // Predicated region
  $region38: #{decoder_future_forward.1} parent=0 // pred_check
    _
  $region39: #{decoder_future_forward.1} parent=0 // pred_check_branch
    %39 = sbr.rel (0) target = $region41
  $region40: #{decoder_future_forward.1} parent=0 // pred_region
    _
  $region41: #{decoder_future_forward.1} parent=0 // pred_fallthru
    _
  // Predicated region
  $region42: #{decoder_future_forward.1} parent=0 // pred_check
    _
  $region43: #{decoder_future_forward.1} parent=0 // pred_check_branch
    %41 = sbr.rel (0) target = $region45
  $region44: #{decoder_future_forward.1} parent=0 // pred_region
    _
  $region45: #{decoder_future_forward.1} parent=0 // pred_fallthru
    _
  // Predicated region
  $region46: #{decoder_future_forward.1} parent=0 // pred_check
    _
  $region47: #{decoder_future_forward.1} parent=0 // pred_check_branch
    %43 = sbr.rel (0) target = $region49
  $region48: #{decoder_future_forward.1} parent=0 // pred_region
    _
  $region49: #{decoder_future_forward.1} parent=0 // pred_fallthru
    _
  // Predicated region
  $region50: #{decoder_future_forward.1} parent=0 // pred_check
    _
  $region51: #{decoder_future_forward.1} parent=0 // pred_check_branch
    %45 = sbr.rel (0) target = $region53
  $region52: #{decoder_future_forward.1} parent=0 // pred_region
    _
  $region53: #{decoder_future_forward.1} parent=0 // pred_fallthru
    _
  // Predicated region
  $region54: #{decoder_future_forward.1} parent=0 // pred_check
    _
  $region55: #{decoder_future_forward.1} parent=0 // pred_check_branch
    %47 = sbr.rel (0) target = $region57
  $region56: #{decoder_future_forward.1} parent=0 // pred_region
    _
  $region57: #{decoder_future_forward.1} parent=0 // pred_fallthru
    _
  // Predicated region
  $region58: #{decoder_future_forward.1} parent=0 // pred_check
    _
  $region59: #{decoder_future_forward.1} parent=0 // pred_check_branch
    %49 = sbr.rel (0) target = $region61
  $region60: #{decoder_future_forward.1} parent=0 // pred_region
    _
  $region61: #{decoder_future_forward.1} parent=0 // pred_fallthru
    _
  %v50 = vld [vmem:[%s0] sm:$0xf]
  %v51 = vld [vmem:[%s2] sm:$0xff]
  %v52 = vld [vmem:[%s2 + $0x8] sm:$0xff]
  %v53 = vld [vmem:[%s3] sm:$0x1]
  %v55 = vperm.slane %v53, 0
  %vm57 = vcmask 130048
  %v59 = vsel %vm57, %v50, 0
  %61 = vmatpush.msra.mxu0 0.0
  %62 = vmatpush.msra.mxu0 0.0
  %63 = vmatpush.msra.mxu0 0.0
  %64 = vmatpush.msra.mxu0 0.0
  %65 = vmatpush.msra.mxu0 0.0
  %66 = vmatpush.msra.mxu0 0.0
  %67 = vmatpush.msra.mxu0 0.0
  %68 = vmatpush.msra.mxu0 0.0
  %69 = vmatpush.msra.mxu0 0.0
  %70 = vmatpush.msra.mxu0 0.0
  %71 = vmatpush.msra.mxu0 0.0
  %72 = vmatpush.msra.mxu0 0.0
  %73 = vmatpush.msra.mxu0 0.0
  %74 = vmatpush.msra.mxu0 0.0
  %75 = vmatpush.msra.mxu0 %v52
  %76 = vmatpush.msra.mxu0 %v51
  %77 = vmatmul.f32.gmra.mxu0 %v59
  %v78 = vpop.f32.mrf.mxu0
  %v79 = vadd.f32 %v55, %v78
  %80 = vdwg.mxu0
  %vm81 = vcmask 253952
  %82 = vst.msk [vmem:[#allocation2] sm:$0x1] %vm81, %v79
  %84 = vrot.lane.b32.xlu0 %v79, 96
  %v85 = vpop.permute.xlu0 %84
  %87 = vst.msk [vmem:[#allocation2 + $0x1] sm:$0x1] %vm81, %v85
  %vm88 = vcmask 254977
  %89 = vst.msk [vmem:[#allocation2 + $0x1] sm:$0x2] %vm88, %v79
  %90 = vst.msk [vmem:[#allocation2 + $0x2] sm:$0x2] %vm88, %v85
  %vm91 = vcmask 256002
  %92 = vst.msk [vmem:[#allocation2 + $0x2] sm:$0x4] %vm91, %v79
  %93 = vst.msk [vmem:[#allocation2 + $0x3] sm:$0x4] %vm91, %v85
  %vm94 = vcmask 257027
  %95 = vst.msk [vmem:[#allocation2 + $0x3] sm:$0x8] %vm94, %v79
  %96 = vst.msk [vmem:[#allocation2 + $0x4] sm:$0x8] %vm94, %v85
  %v97 = vld [vmem:[#allocation2] sm:$0xf]
  %v98 = vld [vmem:[#allocation2 + $0x4] sm:$0xf]
  %v99 = vld [vmem:[%s1] sm:$0xff]
  %v100 = vld [vmem:[%s1 + $0x8] sm:$0xff]
  %v101 = vld [vmem:[%s1 + $0x10] sm:$0xff]
  %v102 = vld [vmem:[%s1 + $0x18] sm:$0xff]
  %v103 = vld [vmem:[%s4] sm:$0xff]
  %v104 = vld [vmem:[%s4 + $0x8] sm:$0xff]
  %v105 = vld [vmem:[%s6] sm:$0x1]
  %v107 = vperm.slane %v105, 0
  %v110 = vsel %vm57, %v99, 0
  %v113 = vsel %vm57, %v100, 0
  %v116 = vsel %vm57, %v101, 0
  %v119 = vsel %vm57, %v102, 0
  %121 = vmatpush.msra.mxu0 0.0
  %122 = vmatpush.msra.mxu0 0.0
  %123 = vmatpush.msra.mxu0 0.0
  %124 = vmatpush.msra.mxu0 0.0
  %125 = vmatpush.msra.mxu0 0.0
  %126 = vmatpush.msra.mxu0 0.0
  %127 = vmatpush.msra.mxu0 0.0
  %128 = vmatpush.msra.mxu0 0.0
  %129 = vmatpush.msra.mxu0 0.0
  %130 = vmatpush.msra.mxu0 0.0
  %131 = vmatpush.msra.mxu0 0.0
  %132 = vmatpush.msra.mxu0 0.0
  %133 = vmatpush.msra.mxu0 0.0
  %134 = vmatpush.msra.mxu0 0.0
  %135 = vmatpush.msra.mxu0 %v104
  %136 = vmatpush.msra.mxu0 %v103
  %137 = vmatmul.f32.gmra.mxu0 %v110
  %v138 = vpop.f32.mrf.mxu0
  %v139 = vadd.f32 %v107, %v138
  %140 = vmatmul.f32.gmra.mxu0 %v113
  %v141 = vpop.f32.mrf.mxu0
  %v142 = vadd.f32 %v107, %v141
  %143 = vmatmul.f32.gmra.mxu0 %v116
  %v144 = vpop.f32.mrf.mxu0
  %v145 = vadd.f32 %v107, %v144
  %146 = vmatmul.f32.gmra.mxu0 %v119
  %v147 = vpop.f32.mrf.mxu0
  %v148 = vadd.f32 %v107, %v147
  %149 = vdwg.mxu0
  %v150 = vld [vmem:[%s8] sm:$0xff]
  %v151 = vld [vmem:[%s8 + $0x8] sm:$0xff]
  %v152 = vld [vmem:[%s10] sm:$0x1]
  %v154 = vperm.slane %v152, 0
  %156 = vmatpush.msra.mxu0 0.0
  %157 = vmatpush.msra.mxu0 0.0
  %158 = vmatpush.msra.mxu0 0.0
  %159 = vmatpush.msra.mxu0 0.0
  %160 = vmatpush.msra.mxu0 0.0
  %161 = vmatpush.msra.mxu0 0.0
  %162 = vmatpush.msra.mxu0 0.0
  %163 = vmatpush.msra.mxu0 0.0
  %164 = vmatpush.msra.mxu0 0.0
  %165 = vmatpush.msra.mxu0 0.0
  %166 = vmatpush.msra.mxu0 0.0
  %167 = vmatpush.msra.mxu0 0.0
  %168 = vmatpush.msra.mxu0 0.0
  %169 = vmatpush.msra.mxu0 0.0
  %170 = vmatpush.msra.mxu0 %v151
  %171 = vmatpush.msra.mxu0 %v150
  %172 = vmatmul.f32.gmra.mxu0 %v110
  %v173 = vpop.f32.mrf.mxu0
  %v174 = vadd.f32 %v154, %v173
  %175 = vmatmul.f32.gmra.mxu0 %v113
  %v176 = vpop.f32.mrf.mxu0
  %v177 = vadd.f32 %v154, %v176
  %178 = vmatmul.f32.gmra.mxu0 %v116
  %v179 = vpop.f32.mrf.mxu0
  %v180 = vadd.f32 %v154, %v179
  %181 = vmatmul.f32.gmra.mxu0 %v119
  %v182 = vpop.f32.mrf.mxu0
  %v183 = vadd.f32 %v154, %v182
  %184 = vdwg.mxu0
  %v185 = vld [vmem:[%s5] sm:$0xff]
  %v186 = vld [vmem:[%s5 + $0x8] sm:$0xff]
  %v187 = vld [vmem:[%s5 + $0x10] sm:$0xff]
  %v188 = vld [vmem:[%s5 + $0x18] sm:$0xff]
  %v189 = vld [vmem:[%s9] sm:$0xff]
  %v190 = vld [vmem:[%s9 + $0x8] sm:$0xff]
  %v191 = vld [vmem:[%s9 + $0x10] sm:$0xff]
  %v192 = vld [vmem:[%s9 + $0x18] sm:$0xff]
  %v193 = vld [vmem:[%s7] sm:$0x1]
  %v194 = vld [vmem:[%s11] sm:$0x1]
  %vm195 = vcmask 261120
  %v197 = vsel %vm195, %v97, 0
  %199 = vmatpush.msra.mxu0 0.0
  %200 = vmatpush.msra.mxu0 0.0
  %201 = vmatpush.msra.mxu0 0.0
  %202 = vmatpush.msra.mxu0 0.0
  %203 = vmatpush.msra.mxu0 0.0
  %204 = vmatpush.msra.mxu0 0.0
  %205 = vmatpush.msra.mxu0 0.0
  %206 = vmatpush.msra.mxu0 0.0
  %207 = vmatpush.msra.mxu0 0.0
  %208 = vmatpush.msra.mxu0 0.0
  %209 = vmatpush.msra.mxu0 0.0
  %210 = vmatpush.msra.mxu0 0.0
  %211 = vmatpush.msra.mxu0 %v188
  %212 = vmatpush.msra.mxu0 %v187
  %213 = vmatpush.msra.mxu0 %v186
  %214 = vmatpush.msra.mxu0 %v185
  %215 = vmatmul.f32.gmra.mxu0 %v197
  %v216 = vpop.f32.mrf.mxu0
  %v217 = vadd.f32 0.0, %v216
  %218 = vdwg.mxu0
  %v219 = vadd.f32 %v139, %v217
  %v220 = vxor.u32 %v219, 2147483648
  %v221 = vmul.f32 %v220, 1.442695
  %v222 = vpow.pop %v221
  %v223 = vadd.f32 %v222, 1.0
  %v224 = vrcp.pop %v223
  %v225 = vmul.f32 %v223, %v224
  %v226 = vsub.f32 1.0, %v225
  %v227 = vmul.f32 %v224, %v226
  %v228 = vadd.f32 %v224, %v227
  %vm229 = vweird.f32 %v223
  %vm230 = vweird.f32 %v224
  %vm231 = vmor %vm229, %vm230
  %v232 = vsel %vm231, %v224, %v228
  %v233 = vand.u32 2147483647, %v223
  %vm234 = vcmp.eq.f32.partialorder %v233, 8.507059e+37
  %v235 = vand.u32 %v223, 2147483648
  %v236 = vor.u32 1.1754944e-38, %v235
  %v237 = vsel %vm234, %v236, %v232
  %v238 = vmul.f32 1.0, %v237
  %v240 = vperm.slane %v193, 0
  %241 = vrot.lane.b32.xlu0 %v240, 64
  %v242 = vpop.permute.xlu0 %241
  %v244 = vadd.f32 %v217, %v242
  %246 = vrot.lane.b32.xlu0 %v244, 64
  %v247 = vpop.permute.xlu0 %246
  %v249 = vmul.f32 %v238, %v247
  %251 = vrot.lane.b32.xlu0 %v249, 64
  %v252 = vpop.permute.xlu0 %251
  %v254 = vadd.f32 %v139, %v252
  %v255 = vtanh.pop %v254
  %v256 = vsub.f32 1.0, %v238
  %258 = vrot.lane.b32.xlu0 %v255, 96
  %v259 = vpop.permute.xlu0 %258
  %v261 = vmul.f32 %v256, %v259
  %262 = vrot.lane.b32.xlu0 %v97, 32
  %v263 = vpop.permute.xlu0 %262
  %v265 = vmul.f32 %v238, %v263
  %v266 = vadd.f32 %v261, %v265
  %268 = vrot.lane.b32.xlu0 %v266, 96
  %v269 = vpop.permute.xlu0 %268
  %vm271 = vcmask 257024
  %272 = vst.msk [vmem:[#allocation3] sm:$0xf] %vm271, %v269
  %v273 = vsel %vm195, %v269, 0
  %275 = vmatpush.msra.mxu0 0.0
  %276 = vmatpush.msra.mxu0 0.0
  %277 = vmatpush.msra.mxu0 0.0
  %278 = vmatpush.msra.mxu0 0.0
  %279 = vmatpush.msra.mxu0 0.0
  %280 = vmatpush.msra.mxu0 0.0
  %281 = vmatpush.msra.mxu0 0.0
  %282 = vmatpush.msra.mxu0 0.0
  %283 = vmatpush.msra.mxu0 0.0
  %284 = vmatpush.msra.mxu0 0.0
  %285 = vmatpush.msra.mxu0 0.0
  %286 = vmatpush.msra.mxu0 0.0
  %287 = vmatpush.msra.mxu0 %v188
  %288 = vmatpush.msra.mxu0 %v187
  %289 = vmatpush.msra.mxu0 %v186
  %290 = vmatpush.msra.mxu0 %v185
  %291 = vmatmul.f32.gmra.mxu0 %v273
  %v292 = vpop.f32.mrf.mxu0
  %v293 = vadd.f32 0.0, %v292
  %294 = vdwg.mxu0
  %v296 = vrot.slane %v293, 4
  %v298 = vadd.f32 %v139, %v296
  %v299 = vxor.u32 %v298, 2147483648
  %v300 = vmul.f32 %v299, 1.442695
  %v301 = vpow.pop %v300
  %v302 = vadd.f32 %v301, 1.0
  %v303 = vrcp.pop %v302
  %v304 = vmul.f32 %v302, %v303
  %v305 = vsub.f32 1.0, %v304
  %v306 = vmul.f32 %v303, %v305
  %v307 = vadd.f32 %v303, %v306
  %vm308 = vweird.f32 %v302
  %vm309 = vweird.f32 %v303
  %vm310 = vmor %vm308, %vm309
  %v311 = vsel %vm310, %v303, %v307
  %v312 = vand.u32 2147483647, %v302
  %vm313 = vcmp.eq.f32.partialorder %v312, 8.507059e+37
  %v314 = vand.u32 %v302, 2147483648
  %v315 = vor.u32 1.1754944e-38, %v314
  %v316 = vsel %vm313, %v315, %v311
  %v317 = vmul.f32 1.0, %v316
  %v318 = vadd.f32 %v293, %v242
  %v320 = vrot.slane %v318, 4
  %321 = vrot.lane.b32.xlu0 %v320, 64
  %v322 = vpop.permute.xlu0 %321
  %v324 = vmul.f32 %v317, %v322
  %326 = vrot.lane.b32.xlu0 %v324, 64
  %v327 = vpop.permute.xlu0 %326
  %v329 = vadd.f32 %v139, %v327
  %v330 = vtanh.pop %v329
  %v331 = vsub.f32 1.0, %v317
  %333 = vrot.lane.b32.xlu0 %v330, 96
  %v334 = vpop.permute.xlu0 %333
  %v336 = vmul.f32 %v331, %v334
  %v337 = vrot.slane %v266, 4
  %v339 = vmul.f32 %v317, %v337
  %v340 = vadd.f32 %v336, %v339
  %342 = vrot.lane.b32.xlu0 %v340, 96
  %v343 = vpop.permute.xlu0 %342
  %vm345 = vcmask 261124
  %346 = vst.msk [vmem:[#allocation3] sm:$0xf0] %vm345, %v343
  %v347 = vrot.slane %v340, 4
  %348 = vrot.lane.b32.xlu0 %v347, 96
  %v349 = vpop.permute.xlu0 %348
  %v350 = vsel %vm195, %v349, 0
  %352 = vmatpush.msra.mxu0 0.0
  %353 = vmatpush.msra.mxu0 0.0
  %354 = vmatpush.msra.mxu0 0.0
  %355 = vmatpush.msra.mxu0 0.0
  %356 = vmatpush.msra.mxu0 0.0
  %357 = vmatpush.msra.mxu0 0.0
  %358 = vmatpush.msra.mxu0 0.0
  %359 = vmatpush.msra.mxu0 0.0
  %360 = vmatpush.msra.mxu0 0.0
  %361 = vmatpush.msra.mxu0 0.0
  %362 = vmatpush.msra.mxu0 0.0
  %363 = vmatpush.msra.mxu0 0.0
  %364 = vmatpush.msra.mxu0 %v188
  %365 = vmatpush.msra.mxu0 %v187
  %366 = vmatpush.msra.mxu0 %v186
  %367 = vmatpush.msra.mxu0 %v185
  %368 = vmatmul.f32.gmra.mxu0 %v350
  %v369 = vpop.f32.mrf.mxu0
  %v370 = vadd.f32 0.0, %v369
  %371 = vdwg.mxu0
  %v372 = vadd.f32 %v142, %v370
  %v373 = vxor.u32 %v372, 2147483648
  %v374 = vmul.f32 %v373, 1.442695
  %v375 = vpow.pop %v374
  %v376 = vadd.f32 %v375, 1.0
  %v377 = vrcp.pop %v376
  %v378 = vmul.f32 %v376, %v377
  %v379 = vsub.f32 1.0, %v378
  %v380 = vmul.f32 %v377, %v379
  %v381 = vadd.f32 %v377, %v380
  %vm382 = vweird.f32 %v376
  %vm383 = vweird.f32 %v377
  %vm384 = vmor %vm382, %vm383
  %v385 = vsel %vm384, %v377, %v381
  %v386 = vand.u32 2147483647, %v376
  %vm387 = vcmp.eq.f32.partialorder %v386, 8.507059e+37
  %v388 = vand.u32 %v376, 2147483648
  %v389 = vor.u32 1.1754944e-38, %v388
  %v390 = vsel %vm387, %v389, %v385
  %v391 = vmul.f32 1.0, %v390
  %v392 = vadd.f32 %v370, %v242
  %394 = vrot.lane.b32.xlu0 %v392, 64
  %v395 = vpop.permute.xlu0 %394
  %v397 = vmul.f32 %v391, %v395
  %399 = vrot.lane.b32.xlu0 %v397, 64
  %v400 = vpop.permute.xlu0 %399
  %v402 = vadd.f32 %v142, %v400
  %v403 = vtanh.pop %v402
  %v404 = vsub.f32 1.0, %v391
  %406 = vrot.lane.b32.xlu0 %v403, 96
  %v407 = vpop.permute.xlu0 %406
  %v409 = vmul.f32 %v404, %v407
  %v411 = vmul.f32 %v391, %v347
  %v412 = vadd.f32 %v409, %v411
  %414 = vrot.lane.b32.xlu0 %v412, 96
  %v415 = vpop.permute.xlu0 %414
  %417 = vst.msk [vmem:[#allocation3 + $0x8] sm:$0xf] %vm271, %v415
  %v418 = vsel %vm195, %v415, 0
  %420 = vmatpush.msra.mxu0 0.0
  %421 = vmatpush.msra.mxu0 0.0
  %422 = vmatpush.msra.mxu0 0.0
  %423 = vmatpush.msra.mxu0 0.0
  %424 = vmatpush.msra.mxu0 0.0
  %425 = vmatpush.msra.mxu0 0.0
  %426 = vmatpush.msra.mxu0 0.0
  %427 = vmatpush.msra.mxu0 0.0
  %428 = vmatpush.msra.mxu0 0.0
  %429 = vmatpush.msra.mxu0 0.0
  %430 = vmatpush.msra.mxu0 0.0
  %431 = vmatpush.msra.mxu0 0.0
  %432 = vmatpush.msra.mxu0 %v188
  %433 = vmatpush.msra.mxu0 %v187
  %434 = vmatpush.msra.mxu0 %v186
  %435 = vmatpush.msra.mxu0 %v185
  %436 = vmatmul.f32.gmra.mxu0 %v418
  %v437 = vpop.f32.mrf.mxu0
  %v438 = vadd.f32 0.0, %v437
  %439 = vdwg.mxu0
  %v441 = vrot.slane %v438, 4
  %v443 = vadd.f32 %v142, %v441
  %v444 = vxor.u32 %v443, 2147483648
  %v445 = vmul.f32 %v444, 1.442695
  %v446 = vpow.pop %v445
  %v447 = vadd.f32 %v446, 1.0
  %v448 = vrcp.pop %v447
  %v449 = vmul.f32 %v447, %v448
  %v450 = vsub.f32 1.0, %v449
  %v451 = vmul.f32 %v448, %v450
  %v452 = vadd.f32 %v448, %v451
  %vm453 = vweird.f32 %v447
  %vm454 = vweird.f32 %v448
  %vm455 = vmor %vm453, %vm454
  %v456 = vsel %vm455, %v448, %v452
  %v457 = vand.u32 2147483647, %v447
  %vm458 = vcmp.eq.f32.partialorder %v457, 8.507059e+37
  %v459 = vand.u32 %v447, 2147483648
  %v460 = vor.u32 1.1754944e-38, %v459
  %v461 = vsel %vm458, %v460, %v456
  %v462 = vmul.f32 1.0, %v461
  %v463 = vadd.f32 %v438, %v242
  %v465 = vrot.slane %v463, 4
  %466 = vrot.lane.b32.xlu0 %v465, 64
  %v467 = vpop.permute.xlu0 %466
  %v469 = vmul.f32 %v462, %v467
  %471 = vrot.lane.b32.xlu0 %v469, 64
  %v472 = vpop.permute.xlu0 %471
  %v474 = vadd.f32 %v142, %v472
  %v475 = vtanh.pop %v474
  %v476 = vsub.f32 1.0, %v462
  %478 = vrot.lane.b32.xlu0 %v475, 96
  %v479 = vpop.permute.xlu0 %478
  %v481 = vmul.f32 %v476, %v479
  %v482 = vrot.slane %v412, 4
  %v484 = vmul.f32 %v462, %v482
  %v485 = vadd.f32 %v481, %v484
  %487 = vrot.lane.b32.xlu0 %v485, 96
  %v488 = vpop.permute.xlu0 %487
  %490 = vst.msk [vmem:[#allocation3 + $0x8] sm:$0xf0] %vm345, %v488
  %v491 = vrot.slane %v485, 4
  %492 = vrot.lane.b32.xlu0 %v491, 96
  %v493 = vpop.permute.xlu0 %492
  %v494 = vsel %vm195, %v493, 0
  %496 = vmatpush.msra.mxu0 0.0
  %497 = vmatpush.msra.mxu0 0.0
  %498 = vmatpush.msra.mxu0 0.0
  %499 = vmatpush.msra.mxu0 0.0
  %500 = vmatpush.msra.mxu0 0.0
  %501 = vmatpush.msra.mxu0 0.0
  %502 = vmatpush.msra.mxu0 0.0
  %503 = vmatpush.msra.mxu0 0.0
  %504 = vmatpush.msra.mxu0 0.0
  %505 = vmatpush.msra.mxu0 0.0
  %506 = vmatpush.msra.mxu0 0.0
  %507 = vmatpush.msra.mxu0 0.0
  %508 = vmatpush.msra.mxu0 %v188
  %509 = vmatpush.msra.mxu0 %v187
  %510 = vmatpush.msra.mxu0 %v186
  %511 = vmatpush.msra.mxu0 %v185
  %512 = vmatmul.f32.gmra.mxu0 %v494
  %v513 = vpop.f32.mrf.mxu0
  %v514 = vadd.f32 0.0, %v513
  %515 = vdwg.mxu0
  %v516 = vadd.f32 %v145, %v514
  %v517 = vxor.u32 %v516, 2147483648
  %v518 = vmul.f32 %v517, 1.442695
  %v519 = vpow.pop %v518
  %v520 = vadd.f32 %v519, 1.0
  %v521 = vrcp.pop %v520
  %v522 = vmul.f32 %v520, %v521
  %v523 = vsub.f32 1.0, %v522
  %v524 = vmul.f32 %v521, %v523
  %v525 = vadd.f32 %v521, %v524
  %vm526 = vweird.f32 %v520
  %vm527 = vweird.f32 %v521
  %vm528 = vmor %vm526, %vm527
  %v529 = vsel %vm528, %v521, %v525
  %v530 = vand.u32 2147483647, %v520
  %vm531 = vcmp.eq.f32.partialorder %v530, 8.507059e+37
  %v532 = vand.u32 %v520, 2147483648
  %v533 = vor.u32 1.1754944e-38, %v532
  %v534 = vsel %vm531, %v533, %v529
  %v535 = vmul.f32 1.0, %v534
  %v536 = vadd.f32 %v514, %v242
  %538 = vrot.lane.b32.xlu0 %v536, 64
  %v539 = vpop.permute.xlu0 %538
  %v541 = vmul.f32 %v535, %v539
  %543 = vrot.lane.b32.xlu0 %v541, 64
  %v544 = vpop.permute.xlu0 %543
  %v546 = vadd.f32 %v145, %v544
  %v547 = vtanh.pop %v546
  %v548 = vsub.f32 1.0, %v535
  %550 = vrot.lane.b32.xlu0 %v547, 96
  %v551 = vpop.permute.xlu0 %550
  %v553 = vmul.f32 %v548, %v551
  %v555 = vmul.f32 %v535, %v491
  %v556 = vadd.f32 %v553, %v555
  %558 = vrot.lane.b32.xlu0 %v556, 96
  %v559 = vpop.permute.xlu0 %558
  %561 = vst.msk [vmem:[#allocation3 + $0x10] sm:$0xf] %vm271, %v559
  %v562 = vsel %vm195, %v559, 0
  %564 = vmatpush.msra.mxu0 0.0
  %565 = vmatpush.msra.mxu0 0.0
  %566 = vmatpush.msra.mxu0 0.0
  %567 = vmatpush.msra.mxu0 0.0
  %568 = vmatpush.msra.mxu0 0.0
  %569 = vmatpush.msra.mxu0 0.0
  %570 = vmatpush.msra.mxu0 0.0
  %571 = vmatpush.msra.mxu0 0.0
  %572 = vmatpush.msra.mxu0 0.0
  %573 = vmatpush.msra.mxu0 0.0
  %574 = vmatpush.msra.mxu0 0.0
  %575 = vmatpush.msra.mxu0 0.0
  %576 = vmatpush.msra.mxu0 %v188
  %577 = vmatpush.msra.mxu0 %v187
  %578 = vmatpush.msra.mxu0 %v186
  %579 = vmatpush.msra.mxu0 %v185
  %580 = vmatmul.f32.gmra.mxu0 %v562
  %v581 = vpop.f32.mrf.mxu0
  %v582 = vadd.f32 0.0, %v581
  %583 = vdwg.mxu0
  %v585 = vrot.slane %v582, 4
  %v587 = vadd.f32 %v145, %v585
  %v588 = vxor.u32 %v587, 2147483648
  %v589 = vmul.f32 %v588, 1.442695
  %v590 = vpow.pop %v589
  %v591 = vadd.f32 %v590, 1.0
  %v592 = vrcp.pop %v591
  %v593 = vmul.f32 %v591, %v592
  %v594 = vsub.f32 1.0, %v593
  %v595 = vmul.f32 %v592, %v594
  %v596 = vadd.f32 %v592, %v595
  %vm597 = vweird.f32 %v591
  %vm598 = vweird.f32 %v592
  %vm599 = vmor %vm597, %vm598
  %v600 = vsel %vm599, %v592, %v596
  %v601 = vand.u32 2147483647, %v591
  %vm602 = vcmp.eq.f32.partialorder %v601, 8.507059e+37
  %v603 = vand.u32 %v591, 2147483648
  %v604 = vor.u32 1.1754944e-38, %v603
  %v605 = vsel %vm602, %v604, %v600
  %v606 = vmul.f32 1.0, %v605
  %v607 = vadd.f32 %v582, %v242
  %v609 = vrot.slane %v607, 4
  %610 = vrot.lane.b32.xlu0 %v609, 64
  %v611 = vpop.permute.xlu0 %610
  %v613 = vmul.f32 %v606, %v611
  %615 = vrot.lane.b32.xlu0 %v613, 64
  %v616 = vpop.permute.xlu0 %615
  %v618 = vadd.f32 %v145, %v616
  %v619 = vtanh.pop %v618
  %v620 = vsub.f32 1.0, %v606
  %622 = vrot.lane.b32.xlu0 %v619, 96
  %v623 = vpop.permute.xlu0 %622
  %v625 = vmul.f32 %v620, %v623
  %v626 = vrot.slane %v556, 4
  %v628 = vmul.f32 %v606, %v626
  %v629 = vadd.f32 %v625, %v628
  %631 = vrot.lane.b32.xlu0 %v629, 96
  %v632 = vpop.permute.xlu0 %631
  %634 = vst.msk [vmem:[#allocation3 + $0x10] sm:$0xf0] %vm345, %v632
  %v635 = vrot.slane %v629, 4
  %636 = vrot.lane.b32.xlu0 %v635, 96
  %v637 = vpop.permute.xlu0 %636
  %v638 = vsel %vm195, %v637, 0
  %640 = vmatpush.msra.mxu0 0.0
  %641 = vmatpush.msra.mxu0 0.0
  %642 = vmatpush.msra.mxu0 0.0
  %643 = vmatpush.msra.mxu0 0.0
  %644 = vmatpush.msra.mxu0 0.0
  %645 = vmatpush.msra.mxu0 0.0
  %646 = vmatpush.msra.mxu0 0.0
  %647 = vmatpush.msra.mxu0 0.0
  %648 = vmatpush.msra.mxu0 0.0
  %649 = vmatpush.msra.mxu0 0.0
  %650 = vmatpush.msra.mxu0 0.0
  %651 = vmatpush.msra.mxu0 0.0
  %652 = vmatpush.msra.mxu0 %v188
  %653 = vmatpush.msra.mxu0 %v187
  %654 = vmatpush.msra.mxu0 %v186
  %655 = vmatpush.msra.mxu0 %v185
  %656 = vmatmul.f32.gmra.mxu0 %v638
  %v657 = vpop.f32.mrf.mxu0
  %v658 = vadd.f32 0.0, %v657
  %659 = vdwg.mxu0
  %v660 = vadd.f32 %v148, %v658
  %v661 = vxor.u32 %v660, 2147483648
  %v662 = vmul.f32 %v661, 1.442695
  %v663 = vpow.pop %v662
  %v664 = vadd.f32 %v663, 1.0
  %v665 = vrcp.pop %v664
  %v666 = vmul.f32 %v664, %v665
  %v667 = vsub.f32 1.0, %v666
  %v668 = vmul.f32 %v665, %v667
  %v669 = vadd.f32 %v665, %v668
  %vm670 = vweird.f32 %v664
  %vm671 = vweird.f32 %v665
  %vm672 = vmor %vm670, %vm671
  %v673 = vsel %vm672, %v665, %v669
  %v674 = vand.u32 2147483647, %v664
  %vm675 = vcmp.eq.f32.partialorder %v674, 8.507059e+37
  %v676 = vand.u32 %v664, 2147483648
  %v677 = vor.u32 1.1754944e-38, %v676
  %v678 = vsel %vm675, %v677, %v673
  %v679 = vmul.f32 1.0, %v678
  %v680 = vadd.f32 %v658, %v242
  %682 = vrot.lane.b32.xlu0 %v680, 64
  %v683 = vpop.permute.xlu0 %682
  %v685 = vmul.f32 %v679, %v683
  %687 = vrot.lane.b32.xlu0 %v685, 64
  %v688 = vpop.permute.xlu0 %687
  %v690 = vadd.f32 %v148, %v688
  %v691 = vtanh.pop %v690
  %v692 = vsub.f32 1.0, %v679
  %694 = vrot.lane.b32.xlu0 %v691, 96
  %v695 = vpop.permute.xlu0 %694
  %v697 = vmul.f32 %v692, %v695
  %v699 = vmul.f32 %v679, %v635
  %v700 = vadd.f32 %v697, %v699
  %702 = vrot.lane.b32.xlu0 %v700, 96
  %v703 = vpop.permute.xlu0 %702
  %705 = vst.msk [vmem:[#allocation3 + $0x18] sm:$0xf] %vm271, %v703
  %v706 = vsel %vm195, %v703, 0
  %708 = vmatpush.msra.mxu0 0.0
  %709 = vmatpush.msra.mxu0 0.0
  %710 = vmatpush.msra.mxu0 0.0
  %711 = vmatpush.msra.mxu0 0.0
  %712 = vmatpush.msra.mxu0 0.0
  %713 = vmatpush.msra.mxu0 0.0
  %714 = vmatpush.msra.mxu0 0.0
  %715 = vmatpush.msra.mxu0 0.0
  %716 = vmatpush.msra.mxu0 0.0
  %717 = vmatpush.msra.mxu0 0.0
  %718 = vmatpush.msra.mxu0 0.0
  %719 = vmatpush.msra.mxu0 0.0
  %720 = vmatpush.msra.mxu0 %v188
  %721 = vmatpush.msra.mxu0 %v187
  %722 = vmatpush.msra.mxu0 %v186
  %723 = vmatpush.msra.mxu0 %v185
  %724 = vmatmul.f32.gmra.mxu0 %v706
  %v725 = vpop.f32.mrf.mxu0
  %v726 = vadd.f32 0.0, %v725
  %727 = vdwg.mxu0
  %v729 = vrot.slane %v726, 4
  %v731 = vadd.f32 %v148, %v729
  %v732 = vxor.u32 %v731, 2147483648
  %v733 = vmul.f32 %v732, 1.442695
  %v734 = vpow.pop %v733
  %v735 = vadd.f32 %v734, 1.0
  %v736 = vrcp.pop %v735
  %v737 = vmul.f32 %v735, %v736
  %v738 = vsub.f32 1.0, %v737
  %v739 = vmul.f32 %v736, %v738
  %v740 = vadd.f32 %v736, %v739
  %vm741 = vweird.f32 %v735
  %vm742 = vweird.f32 %v736
  %vm743 = vmor %vm741, %vm742
  %v744 = vsel %vm743, %v736, %v740
  %v745 = vand.u32 2147483647, %v735
  %vm746 = vcmp.eq.f32.partialorder %v745, 8.507059e+37
  %v747 = vand.u32 %v735, 2147483648
  %v748 = vor.u32 1.1754944e-38, %v747
  %v749 = vsel %vm746, %v748, %v744
  %v750 = vmul.f32 1.0, %v749
  %v751 = vadd.f32 %v726, %v242
  %v753 = vrot.slane %v751, 4
  %754 = vrot.lane.b32.xlu0 %v753, 64
  %v755 = vpop.permute.xlu0 %754
  %v757 = vmul.f32 %v750, %v755
  %759 = vrot.lane.b32.xlu0 %v757, 64
  %v760 = vpop.permute.xlu0 %759
  %v762 = vadd.f32 %v148, %v760
  %v763 = vtanh.pop %v762
  %v764 = vsub.f32 1.0, %v750
  %766 = vrot.lane.b32.xlu0 %v763, 96
  %v767 = vpop.permute.xlu0 %766
  %v769 = vmul.f32 %v764, %v767
  %v770 = vrot.slane %v700, 4
  %v772 = vmul.f32 %v750, %v770
  %v773 = vadd.f32 %v769, %v772
  %775 = vrot.lane.b32.xlu0 %v773, 96
  %v776 = vpop.permute.xlu0 %775
  %778 = vst.msk [vmem:[#allocation3 + $0x18] sm:$0xf0] %vm345, %v776
  %v780 = vsel %vm195, %v98, 0
  %782 = vmatpush.msra.mxu0 0.0
  %783 = vmatpush.msra.mxu0 0.0
  %784 = vmatpush.msra.mxu0 0.0
  %785 = vmatpush.msra.mxu0 0.0
  %786 = vmatpush.msra.mxu0 0.0
  %787 = vmatpush.msra.mxu0 0.0
  %788 = vmatpush.msra.mxu0 0.0
  %789 = vmatpush.msra.mxu0 0.0
  %790 = vmatpush.msra.mxu0 0.0
  %791 = vmatpush.msra.mxu0 0.0
  %792 = vmatpush.msra.mxu0 0.0
  %793 = vmatpush.msra.mxu0 0.0
  %794 = vmatpush.msra.mxu0 %v192
  %795 = vmatpush.msra.mxu0 %v191
  %796 = vmatpush.msra.mxu0 %v190
  %797 = vmatpush.msra.mxu0 %v189
  %798 = vmatmul.f32.gmra.mxu0 %v780
  %v799 = vpop.f32.mrf.mxu0
  %v800 = vadd.f32 0.0, %v799
  %801 = vdwg.mxu0
  %v803 = vrot.slane %v800, 4
  %v805 = vadd.f32 %v183, %v803
  %v806 = vxor.u32 %v805, 2147483648
  %v807 = vmul.f32 %v806, 1.442695
  %v808 = vpow.pop %v807
  %v809 = vadd.f32 %v808, 1.0
  %v810 = vrcp.pop %v809
  %v811 = vmul.f32 %v809, %v810
  %v812 = vsub.f32 1.0, %v811
  %v813 = vmul.f32 %v810, %v812
  %v814 = vadd.f32 %v810, %v813
  %vm815 = vweird.f32 %v809
  %vm816 = vweird.f32 %v810
  %vm817 = vmor %vm815, %vm816
  %v818 = vsel %vm817, %v810, %v814
  %v819 = vand.u32 2147483647, %v809
  %vm820 = vcmp.eq.f32.partialorder %v819, 8.507059e+37
  %v821 = vand.u32 %v809, 2147483648
  %v822 = vor.u32 1.1754944e-38, %v821
  %v823 = vsel %vm820, %v822, %v818
  %v824 = vmul.f32 1.0, %v823
  %v826 = vperm.slane %v194, 0
  %827 = vrot.lane.b32.xlu0 %v826, 64
  %v828 = vpop.permute.xlu0 %827
  %v830 = vadd.f32 %v800, %v828
  %v832 = vrot.slane %v830, 4
  %833 = vrot.lane.b32.xlu0 %v832, 64
  %v834 = vpop.permute.xlu0 %833
  %v836 = vmul.f32 %v824, %v834
  %838 = vrot.lane.b32.xlu0 %v836, 64
  %v839 = vpop.permute.xlu0 %838
  %v841 = vadd.f32 %v183, %v839
  %v842 = vtanh.pop %v841
  %v843 = vsub.f32 1.0, %v824
  %845 = vrot.lane.b32.xlu0 %v842, 96
  %v846 = vpop.permute.xlu0 %845
  %v848 = vmul.f32 %v843, %v846
  %v849 = vrot.slane %v98, 4
  %850 = vrot.lane.b32.xlu0 %v849, 32
  %v851 = vpop.permute.xlu0 %850
  %v853 = vmul.f32 %v824, %v851
  %v854 = vadd.f32 %v848, %v853
  %856 = vrot.lane.b32.xlu0 %v854, 96
  %v857 = vpop.permute.xlu0 %856
  %859 = vst.msk [vmem:[#allocation4 + $0x18] sm:$0xf0] %vm345, %v857
  %v860 = vrot.slane %v854, 4
  %861 = vrot.lane.b32.xlu0 %v860, 96
  %v862 = vpop.permute.xlu0 %861
  %v863 = vsel %vm195, %v862, 0
  %865 = vmatpush.msra.mxu0 0.0
  %866 = vmatpush.msra.mxu0 0.0
  %867 = vmatpush.msra.mxu0 0.0
  %868 = vmatpush.msra.mxu0 0.0
  %869 = vmatpush.msra.mxu0 0.0
  %870 = vmatpush.msra.mxu0 0.0
  %871 = vmatpush.msra.mxu0 0.0
  %872 = vmatpush.msra.mxu0 0.0
  %873 = vmatpush.msra.mxu0 0.0
  %874 = vmatpush.msra.mxu0 0.0
  %875 = vmatpush.msra.mxu0 0.0
  %876 = vmatpush.msra.mxu0 0.0
  %877 = vmatpush.msra.mxu0 %v192
  %878 = vmatpush.msra.mxu0 %v191
  %879 = vmatpush.msra.mxu0 %v190
  %880 = vmatpush.msra.mxu0 %v189
  %881 = vmatmul.f32.gmra.mxu0 %v863
  %v882 = vpop.f32.mrf.mxu0
  %v883 = vadd.f32 0.0, %v882
  %884 = vdwg.mxu0
  %v885 = vadd.f32 %v183, %v883
  %v886 = vxor.u32 %v885, 2147483648
  %v887 = vmul.f32 %v886, 1.442695
  %v888 = vpow.pop %v887
  %v889 = vadd.f32 %v888, 1.0
  %v890 = vrcp.pop %v889
  %v891 = vmul.f32 %v889, %v890
  %v892 = vsub.f32 1.0, %v891
  %v893 = vmul.f32 %v890, %v892
  %v894 = vadd.f32 %v890, %v893
  %vm895 = vweird.f32 %v889
  %vm896 = vweird.f32 %v890
  %vm897 = vmor %vm895, %vm896
  %v898 = vsel %vm897, %v890, %v894
  %v899 = vand.u32 2147483647, %v889
  %vm900 = vcmp.eq.f32.partialorder %v899, 8.507059e+37
  %v901 = vand.u32 %v889, 2147483648
  %v902 = vor.u32 1.1754944e-38, %v901
  %v903 = vsel %vm900, %v902, %v898
  %v904 = vmul.f32 1.0, %v903
  %v905 = vadd.f32 %v883, %v828
  %907 = vrot.lane.b32.xlu0 %v905, 64
  %v908 = vpop.permute.xlu0 %907
  %v910 = vmul.f32 %v904, %v908
  %912 = vrot.lane.b32.xlu0 %v910, 64
  %v913 = vpop.permute.xlu0 %912
  %v915 = vadd.f32 %v183, %v913
  %v916 = vtanh.pop %v915
  %v917 = vsub.f32 1.0, %v904
  %919 = vrot.lane.b32.xlu0 %v916, 96
  %v920 = vpop.permute.xlu0 %919
  %v922 = vmul.f32 %v917, %v920
  %v924 = vmul.f32 %v904, %v860
  %v925 = vadd.f32 %v922, %v924
  %927 = vrot.lane.b32.xlu0 %v925, 96
  %v928 = vpop.permute.xlu0 %927
  %930 = vst.msk [vmem:[#allocation4 + $0x18] sm:$0xf] %vm271, %v928
  %v931 = vsel %vm195, %v928, 0
  %933 = vmatpush.msra.mxu0 0.0
  %934 = vmatpush.msra.mxu0 0.0
  %935 = vmatpush.msra.mxu0 0.0
  %936 = vmatpush.msra.mxu0 0.0
  %937 = vmatpush.msra.mxu0 0.0
  %938 = vmatpush.msra.mxu0 0.0
  %939 = vmatpush.msra.mxu0 0.0
  %940 = vmatpush.msra.mxu0 0.0
  %941 = vmatpush.msra.mxu0 0.0
  %942 = vmatpush.msra.mxu0 0.0
  %943 = vmatpush.msra.mxu0 0.0
  %944 = vmatpush.msra.mxu0 0.0
  %945 = vmatpush.msra.mxu0 %v192
  %946 = vmatpush.msra.mxu0 %v191
  %947 = vmatpush.msra.mxu0 %v190
  %948 = vmatpush.msra.mxu0 %v189
  %949 = vmatmul.f32.gmra.mxu0 %v931
  %v950 = vpop.f32.mrf.mxu0
  %v951 = vadd.f32 0.0, %v950
  %952 = vdwg.mxu0
  %v954 = vrot.slane %v951, 4
  %v956 = vadd.f32 %v180, %v954
  %v957 = vxor.u32 %v956, 2147483648
  %v958 = vmul.f32 %v957, 1.442695
  %v959 = vpow.pop %v958
  %v960 = vadd.f32 %v959, 1.0
  %v961 = vrcp.pop %v960
  %v962 = vmul.f32 %v960, %v961
  %v963 = vsub.f32 1.0, %v962
  %v964 = vmul.f32 %v961, %v963
  %v965 = vadd.f32 %v961, %v964
  %vm966 = vweird.f32 %v960
  %vm967 = vweird.f32 %v961
  %vm968 = vmor %vm966, %vm967
  %v969 = vsel %vm968, %v961, %v965
  %v970 = vand.u32 2147483647, %v960
  %vm971 = vcmp.eq.f32.partialorder %v970, 8.507059e+37
  %v972 = vand.u32 %v960, 2147483648
  %v973 = vor.u32 1.1754944e-38, %v972
  %v974 = vsel %vm971, %v973, %v969
  %v975 = vmul.f32 1.0, %v974
  %v976 = vadd.f32 %v951, %v828
  %v978 = vrot.slane %v976, 4
  %979 = vrot.lane.b32.xlu0 %v978, 64
  %v980 = vpop.permute.xlu0 %979
  %v982 = vmul.f32 %v975, %v980
  %984 = vrot.lane.b32.xlu0 %v982, 64
  %v985 = vpop.permute.xlu0 %984
  %v987 = vadd.f32 %v180, %v985
  %v988 = vtanh.pop %v987
  %v989 = vsub.f32 1.0, %v975
  %991 = vrot.lane.b32.xlu0 %v988, 96
  %v992 = vpop.permute.xlu0 %991
  %v994 = vmul.f32 %v989, %v992
  %v995 = vrot.slane %v925, 4
  %v997 = vmul.f32 %v975, %v995
  %v998 = vadd.f32 %v994, %v997
  %1000 = vrot.lane.b32.xlu0 %v998, 96
  %v1001 = vpop.permute.xlu0 %1000
  %1003 = vst.msk [vmem:[#allocation4 + $0x10] sm:$0xf0] %vm345, %v1001
  %v1004 = vrot.slane %v998, 4
  %1005 = vrot.lane.b32.xlu0 %v1004, 96
  %v1006 = vpop.permute.xlu0 %1005
  %v1007 = vsel %vm195, %v1006, 0
  %1009 = vmatpush.msra.mxu0 0.0
  %1010 = vmatpush.msra.mxu0 0.0
  %1011 = vmatpush.msra.mxu0 0.0
  %1012 = vmatpush.msra.mxu0 0.0
  %1013 = vmatpush.msra.mxu0 0.0
  %1014 = vmatpush.msra.mxu0 0.0
  %1015 = vmatpush.msra.mxu0 0.0
  %1016 = vmatpush.msra.mxu0 0.0
  %1017 = vmatpush.msra.mxu0 0.0
  %1018 = vmatpush.msra.mxu0 0.0
  %1019 = vmatpush.msra.mxu0 0.0
  %1020 = vmatpush.msra.mxu0 0.0
  %1021 = vmatpush.msra.mxu0 %v192
  %1022 = vmatpush.msra.mxu0 %v191
  %1023 = vmatpush.msra.mxu0 %v190
  %1024 = vmatpush.msra.mxu0 %v189
  %1025 = vmatmul.f32.gmra.mxu0 %v1007
  %v1026 = vpop.f32.mrf.mxu0
  %v1027 = vadd.f32 0.0, %v1026
  %1028 = vdwg.mxu0
  %v1029 = vadd.f32 %v180, %v1027
  %v1030 = vxor.u32 %v1029, 2147483648
  %v1031 = vmul.f32 %v1030, 1.442695
  %v1032 = vpow.pop %v1031
  %v1033 = vadd.f32 %v1032, 1.0
  %v1034 = vrcp.pop %v1033
  %v1035 = vmul.f32 %v1033, %v1034
  %v1036 = vsub.f32 1.0, %v1035
  %v1037 = vmul.f32 %v1034, %v1036
  %v1038 = vadd.f32 %v1034, %v1037
  %vm1039 = vweird.f32 %v1033
  %vm1040 = vweird.f32 %v1034
  %vm1041 = vmor %vm1039, %vm1040
  %v1042 = vsel %vm1041, %v1034, %v1038
  %v1043 = vand.u32 2147483647, %v1033
  %vm1044 = vcmp.eq.f32.partialorder %v1043, 8.507059e+37
  %v1045 = vand.u32 %v1033, 2147483648
  %v1046 = vor.u32 1.1754944e-38, %v1045
  %v1047 = vsel %vm1044, %v1046, %v1042
  %v1048 = vmul.f32 1.0, %v1047
  %v1049 = vadd.f32 %v1027, %v828
  %1051 = vrot.lane.b32.xlu0 %v1049, 64
  %v1052 = vpop.permute.xlu0 %1051
  %v1054 = vmul.f32 %v1048, %v1052
  %1056 = vrot.lane.b32.xlu0 %v1054, 64
  %v1057 = vpop.permute.xlu0 %1056
  %v1059 = vadd.f32 %v180, %v1057
  %v1060 = vtanh.pop %v1059
  %v1061 = vsub.f32 1.0, %v1048
  %1063 = vrot.lane.b32.xlu0 %v1060, 96
  %v1064 = vpop.permute.xlu0 %1063
  %v1066 = vmul.f32 %v1061, %v1064
  %v1068 = vmul.f32 %v1048, %v1004
  %v1069 = vadd.f32 %v1066, %v1068
  %1071 = vrot.lane.b32.xlu0 %v1069, 96
  %v1072 = vpop.permute.xlu0 %1071
  %1074 = vst.msk [vmem:[#allocation4 + $0x10] sm:$0xf] %vm271, %v1072
  %v1075 = vsel %vm195, %v1072, 0
  %1077 = vmatpush.msra.mxu0 0.0
  %1078 = vmatpush.msra.mxu0 0.0
  %1079 = vmatpush.msra.mxu0 0.0
  %1080 = vmatpush.msra.mxu0 0.0
  %1081 = vmatpush.msra.mxu0 0.0
  %1082 = vmatpush.msra.mxu0 0.0
  %1083 = vmatpush.msra.mxu0 0.0
  %1084 = vmatpush.msra.mxu0 0.0
  %1085 = vmatpush.msra.mxu0 0.0
  %1086 = vmatpush.msra.mxu0 0.0
  %1087 = vmatpush.msra.mxu0 0.0
  %1088 = vmatpush.msra.mxu0 0.0
  %1089 = vmatpush.msra.mxu0 %v192
  %1090 = vmatpush.msra.mxu0 %v191
  %1091 = vmatpush.msra.mxu0 %v190
  %1092 = vmatpush.msra.mxu0 %v189
  %1093 = vmatmul.f32.gmra.mxu0 %v1075
  %v1094 = vpop.f32.mrf.mxu0
  %v1095 = vadd.f32 0.0, %v1094
  %1096 = vdwg.mxu0
  %v1098 = vrot.slane %v1095, 4
  %v1100 = vadd.f32 %v177, %v1098
  %v1101 = vxor.u32 %v1100, 2147483648
  %v1102 = vmul.f32 %v1101, 1.442695
  %v1103 = vpow.pop %v1102
  %v1104 = vadd.f32 %v1103, 1.0
  %v1105 = vrcp.pop %v1104
  %v1106 = vmul.f32 %v1104, %v1105
  %v1107 = vsub.f32 1.0, %v1106
  %v1108 = vmul.f32 %v1105, %v1107
  %v1109 = vadd.f32 %v1105, %v1108
  %vm1110 = vweird.f32 %v1104
  %vm1111 = vweird.f32 %v1105
  %vm1112 = vmor %vm1110, %vm1111
  %v1113 = vsel %vm1112, %v1105, %v1109
  %v1114 = vand.u32 2147483647, %v1104
  %vm1115 = vcmp.eq.f32.partialorder %v1114, 8.507059e+37
  %v1116 = vand.u32 %v1104, 2147483648
  %v1117 = vor.u32 1.1754944e-38, %v1116
  %v1118 = vsel %vm1115, %v1117, %v1113
  %v1119 = vmul.f32 1.0, %v1118
  %v1120 = vadd.f32 %v1095, %v828
  %v1122 = vrot.slane %v1120, 4
  %1123 = vrot.lane.b32.xlu0 %v1122, 64
  %v1124 = vpop.permute.xlu0 %1123
  %v1126 = vmul.f32 %v1119, %v1124
  %1128 = vrot.lane.b32.xlu0 %v1126, 64
  %v1129 = vpop.permute.xlu0 %1128
  %v1131 = vadd.f32 %v177, %v1129
  %v1132 = vtanh.pop %v1131
  %v1133 = vsub.f32 1.0, %v1119
  %1135 = vrot.lane.b32.xlu0 %v1132, 96
  %v1136 = vpop.permute.xlu0 %1135
  %v1138 = vmul.f32 %v1133, %v1136
  %v1139 = vrot.slane %v1069, 4
  %v1141 = vmul.f32 %v1119, %v1139
  %v1142 = vadd.f32 %v1138, %v1141
  %1144 = vrot.lane.b32.xlu0 %v1142, 96
  %v1145 = vpop.permute.xlu0 %1144
  %1147 = vst.msk [vmem:[#allocation4 + $0x8] sm:$0xf0] %vm345, %v1145
  %v1148 = vrot.slane %v1142, 4
  %1149 = vrot.lane.b32.xlu0 %v1148, 96
  %v1150 = vpop.permute.xlu0 %1149
  %v1151 = vsel %vm195, %v1150, 0
  %1153 = vmatpush.msra.mxu0 0.0
  %1154 = vmatpush.msra.mxu0 0.0
  %1155 = vmatpush.msra.mxu0 0.0
  %1156 = vmatpush.msra.mxu0 0.0
  %1157 = vmatpush.msra.mxu0 0.0
  %1158 = vmatpush.msra.mxu0 0.0
  %1159 = vmatpush.msra.mxu0 0.0
  %1160 = vmatpush.msra.mxu0 0.0
  %1161 = vmatpush.msra.mxu0 0.0
  %1162 = vmatpush.msra.mxu0 0.0
  %1163 = vmatpush.msra.mxu0 0.0
  %1164 = vmatpush.msra.mxu0 0.0
  %1165 = vmatpush.msra.mxu0 %v192
  %1166 = vmatpush.msra.mxu0 %v191
  %1167 = vmatpush.msra.mxu0 %v190
  %1168 = vmatpush.msra.mxu0 %v189
  %1169 = vmatmul.f32.gmra.mxu0 %v1151
  %v1170 = vpop.f32.mrf.mxu0
  %v1171 = vadd.f32 0.0, %v1170
  %1172 = vdwg.mxu0
  %v1173 = vadd.f32 %v177, %v1171
  %v1174 = vxor.u32 %v1173, 2147483648
  %v1175 = vmul.f32 %v1174, 1.442695
  %v1176 = vpow.pop %v1175
  %v1177 = vadd.f32 %v1176, 1.0
  %v1178 = vrcp.pop %v1177
  %v1179 = vmul.f32 %v1177, %v1178
  %v1180 = vsub.f32 1.0, %v1179
  %v1181 = vmul.f32 %v1178, %v1180
  %v1182 = vadd.f32 %v1178, %v1181
  %vm1183 = vweird.f32 %v1177
  %vm1184 = vweird.f32 %v1178
  %vm1185 = vmor %vm1183, %vm1184
  %v1186 = vsel %vm1185, %v1178, %v1182
  %v1187 = vand.u32 2147483647, %v1177
  %vm1188 = vcmp.eq.f32.partialorder %v1187, 8.507059e+37
  %v1189 = vand.u32 %v1177, 2147483648
  %v1190 = vor.u32 1.1754944e-38, %v1189
  %v1191 = vsel %vm1188, %v1190, %v1186
  %v1192 = vmul.f32 1.0, %v1191
  %v1193 = vadd.f32 %v1171, %v828
  %1195 = vrot.lane.b32.xlu0 %v1193, 64
  %v1196 = vpop.permute.xlu0 %1195
  %v1198 = vmul.f32 %v1192, %v1196
  %1200 = vrot.lane.b32.xlu0 %v1198, 64
  %v1201 = vpop.permute.xlu0 %1200
  %v1203 = vadd.f32 %v177, %v1201
  %v1204 = vtanh.pop %v1203
  %v1205 = vsub.f32 1.0, %v1192
  %1207 = vrot.lane.b32.xlu0 %v1204, 96
  %v1208 = vpop.permute.xlu0 %1207
  %v1210 = vmul.f32 %v1205, %v1208
  %v1212 = vmul.f32 %v1192, %v1148
  %v1213 = vadd.f32 %v1210, %v1212
  %1215 = vrot.lane.b32.xlu0 %v1213, 96
  %v1216 = vpop.permute.xlu0 %1215
  %1218 = vst.msk [vmem:[#allocation4 + $0x8] sm:$0xf] %vm271, %v1216
  %v1219 = vsel %vm195, %v1216, 0
  %1221 = vmatpush.msra.mxu0 0.0
  %1222 = vmatpush.msra.mxu0 0.0
  %1223 = vmatpush.msra.mxu0 0.0
  %1224 = vmatpush.msra.mxu0 0.0
  %1225 = vmatpush.msra.mxu0 0.0
  %1226 = vmatpush.msra.mxu0 0.0
  %1227 = vmatpush.msra.mxu0 0.0
  %1228 = vmatpush.msra.mxu0 0.0
  %1229 = vmatpush.msra.mxu0 0.0
  %1230 = vmatpush.msra.mxu0 0.0
  %1231 = vmatpush.msra.mxu0 0.0
  %1232 = vmatpush.msra.mxu0 0.0
  %1233 = vmatpush.msra.mxu0 %v192
  %1234 = vmatpush.msra.mxu0 %v191
  %1235 = vmatpush.msra.mxu0 %v190
  %1236 = vmatpush.msra.mxu0 %v189
  %1237 = vmatmul.f32.gmra.mxu0 %v1219
  %v1238 = vpop.f32.mrf.mxu0
  %v1239 = vadd.f32 0.0, %v1238
  %1240 = vdwg.mxu0
  %v1242 = vrot.slane %v1239, 4
  %v1244 = vadd.f32 %v174, %v1242
  %v1245 = vxor.u32 %v1244, 2147483648
  %v1246 = vmul.f32 %v1245, 1.442695
  %v1247 = vpow.pop %v1246
  %v1248 = vadd.f32 %v1247, 1.0
  %v1249 = vrcp.pop %v1248
  %v1250 = vmul.f32 %v1248, %v1249
  %v1251 = vsub.f32 1.0, %v1250
  %v1252 = vmul.f32 %v1249, %v1251
  %v1253 = vadd.f32 %v1249, %v1252
  %vm1254 = vweird.f32 %v1248
  %vm1255 = vweird.f32 %v1249
  %vm1256 = vmor %vm1254, %vm1255
  %v1257 = vsel %vm1256, %v1249, %v1253
  %v1258 = vand.u32 2147483647, %v1248
  %vm1259 = vcmp.eq.f32.partialorder %v1258, 8.507059e+37
  %v1260 = vand.u32 %v1248, 2147483648
  %v1261 = vor.u32 1.1754944e-38, %v1260
  %v1262 = vsel %vm1259, %v1261, %v1257
  %v1263 = vmul.f32 1.0, %v1262
  %v1264 = vadd.f32 %v1239, %v828
  %v1266 = vrot.slane %v1264, 4
  %1267 = vrot.lane.b32.xlu0 %v1266, 64
  %v1268 = vpop.permute.xlu0 %1267
  %v1270 = vmul.f32 %v1263, %v1268
  %1272 = vrot.lane.b32.xlu0 %v1270, 64
  %v1273 = vpop.permute.xlu0 %1272
  %v1275 = vadd.f32 %v174, %v1273
  %v1276 = vtanh.pop %v1275
  %v1277 = vsub.f32 1.0, %v1263
  %1279 = vrot.lane.b32.xlu0 %v1276, 96
  %v1280 = vpop.permute.xlu0 %1279
  %v1282 = vmul.f32 %v1277, %v1280
  %v1283 = vrot.slane %v1213, 4
  %v1285 = vmul.f32 %v1263, %v1283
  %v1286 = vadd.f32 %v1282, %v1285
  %1288 = vrot.lane.b32.xlu0 %v1286, 96
  %v1289 = vpop.permute.xlu0 %1288
  %1291 = vst.msk [vmem:[#allocation4] sm:$0xf0] %vm345, %v1289
  %v1292 = vrot.slane %v1286, 4
  %1293 = vrot.lane.b32.xlu0 %v1292, 96
  %v1294 = vpop.permute.xlu0 %1293
  %v1295 = vsel %vm195, %v1294, 0
  %1297 = vmatpush.msra.mxu0 0.0
  %1298 = vmatpush.msra.mxu0 0.0
  %1299 = vmatpush.msra.mxu0 0.0
  %1300 = vmatpush.msra.mxu0 0.0
  %1301 = vmatpush.msra.mxu0 0.0
  %1302 = vmatpush.msra.mxu0 0.0
  %1303 = vmatpush.msra.mxu0 0.0
  %1304 = vmatpush.msra.mxu0 0.0
  %1305 = vmatpush.msra.mxu0 0.0
  %1306 = vmatpush.msra.mxu0 0.0
  %1307 = vmatpush.msra.mxu0 0.0
  %1308 = vmatpush.msra.mxu0 0.0
  %1309 = vmatpush.msra.mxu0 %v192
  %1310 = vmatpush.msra.mxu0 %v191
  %1311 = vmatpush.msra.mxu0 %v190
  %1312 = vmatpush.msra.mxu0 %v189
  %1313 = vmatmul.f32.gmra.mxu0 %v1295
  %v1314 = vpop.f32.mrf.mxu0
  %v1315 = vadd.f32 0.0, %v1314
  %1316 = vdwg.mxu0
  %v1317 = vadd.f32 %v174, %v1315
  %v1318 = vxor.u32 %v1317, 2147483648
  %v1319 = vmul.f32 %v1318, 1.442695
  %v1320 = vpow.pop %v1319
  %v1321 = vadd.f32 %v1320, 1.0
  %v1322 = vrcp.pop %v1321
  %v1323 = vmul.f32 %v1321, %v1322
  %v1324 = vsub.f32 1.0, %v1323
  %v1325 = vmul.f32 %v1322, %v1324
  %v1326 = vadd.f32 %v1322, %v1325
  %vm1327 = vweird.f32 %v1321
  %vm1328 = vweird.f32 %v1322
  %vm1329 = vmor %vm1327, %vm1328
  %v1330 = vsel %vm1329, %v1322, %v1326
  %v1331 = vand.u32 2147483647, %v1321
  %vm1332 = vcmp.eq.f32.partialorder %v1331, 8.507059e+37
  %v1333 = vand.u32 %v1321, 2147483648
  %v1334 = vor.u32 1.1754944e-38, %v1333
  %v1335 = vsel %vm1332, %v1334, %v1330
  %v1336 = vmul.f32 1.0, %v1335
  %v1337 = vadd.f32 %v1315, %v828
  %1339 = vrot.lane.b32.xlu0 %v1337, 64
  %v1340 = vpop.permute.xlu0 %1339
  %v1342 = vmul.f32 %v1336, %v1340
  %1344 = vrot.lane.b32.xlu0 %v1342, 64
  %v1345 = vpop.permute.xlu0 %1344
  %v1347 = vadd.f32 %v174, %v1345
  %v1348 = vtanh.pop %v1347
  %v1349 = vsub.f32 1.0, %v1336
  %1351 = vrot.lane.b32.xlu0 %v1348, 96
  %v1352 = vpop.permute.xlu0 %1351
  %v1354 = vmul.f32 %v1349, %v1352
  %v1356 = vmul.f32 %v1336, %v1292
  %v1357 = vadd.f32 %v1354, %v1356
  %1359 = vrot.lane.b32.xlu0 %v1357, 96
  %v1360 = vpop.permute.xlu0 %1359
  %1362 = vst.msk [vmem:[#allocation4] sm:$0xf] %vm271, %v1360
  %v1363 = vld [vmem:[#allocation3] sm:$0xff]
  %v1364 = vld [vmem:[#allocation3 + $0x8] sm:$0xff]
  %v1365 = vld [vmem:[#allocation3 + $0x10] sm:$0xff]
  %v1366 = vld [vmem:[#allocation3 + $0x18] sm:$0xff]
  %v1367 = vld [vmem:[%s12] sm:$0xff]
  %v1368 = vld [vmem:[%s12 + $0x8] sm:$0xff]
  %v1369 = vld [vmem:[%s12 + $0x10] sm:$0xff]
  %v1370 = vld [vmem:[%s12 + $0x18] sm:$0xff]
  %v1371 = vld [vmem:[#allocation4] sm:$0xff]
  %v1372 = vld [vmem:[#allocation4 + $0x8] sm:$0xff]
  %v1373 = vld [vmem:[#allocation4 + $0x10] sm:$0xff]
  %v1374 = vld [vmem:[#allocation4 + $0x18] sm:$0xff]
  %v1375 = vld [vmem:[%s13] sm:$0xff]
  %v1376 = vld [vmem:[%s13 + $0x8] sm:$0xff]
  %v1377 = vld [vmem:[%s13 + $0x10] sm:$0xff]
  %v1378 = vld [vmem:[%s13 + $0x18] sm:$0xff]
  %v1380 = vsel %vm195, %v1371, 0
  %v1383 = vsel %vm195, %v1372, 0
  %v1386 = vsel %vm195, %v1373, 0
  %v1389 = vsel %vm195, %v1374, 0
  %1391 = vmatpush.msra.mxu0 0.0
  %1392 = vmatpush.msra.mxu0 0.0
  %1393 = vmatpush.msra.mxu0 0.0
  %1394 = vmatpush.msra.mxu0 0.0
  %1395 = vmatpush.msra.mxu0 0.0
  %1396 = vmatpush.msra.mxu0 0.0
  %1397 = vmatpush.msra.mxu0 0.0
  %1398 = vmatpush.msra.mxu0 0.0
  %1399 = vmatpush.msra.mxu0 0.0
  %1400 = vmatpush.msra.mxu0 0.0
  %1401 = vmatpush.msra.mxu0 0.0
  %1402 = vmatpush.msra.mxu0 0.0
  %1403 = vmatpush.msra.mxu0 %v1378
  %1404 = vmatpush.msra.mxu0 %v1377
  %1405 = vmatpush.msra.mxu0 %v1376
  %1406 = vmatpush.msra.mxu0 %v1375
  %1407 = vmatmul.f32.gmra.mxu0 %v1380
  %v1408 = vpop.f32.mrf.mxu0
  %v1409 = vadd.f32 0.0, %v1408
  %1410 = vmatmul.f32.gmra.mxu0 %v1383
  %v1411 = vpop.f32.mrf.mxu0
  %v1412 = vadd.f32 0.0, %v1411
  %1413 = vmatmul.f32.gmra.mxu0 %v1386
  %v1414 = vpop.f32.mrf.mxu0
  %v1415 = vadd.f32 0.0, %v1414
  %1416 = vmatmul.f32.gmra.mxu0 %v1389
  %v1417 = vpop.f32.mrf.mxu0
  %v1418 = vadd.f32 0.0, %v1417
  %1419 = vdwg.mxu0
  %v1421 = vsel %vm195, %v1363, 0
  %v1424 = vsel %vm195, %v1364, 0
  %v1427 = vsel %vm195, %v1365, 0
  %v1430 = vsel %vm195, %v1366, 0
  %1432 = vmatpush.msra.mxu0 0.0
  %1433 = vmatpush.msra.mxu0 0.0
  %1434 = vmatpush.msra.mxu0 0.0
  %1435 = vmatpush.msra.mxu0 0.0
  %1436 = vmatpush.msra.mxu0 0.0
  %1437 = vmatpush.msra.mxu0 0.0
  %1438 = vmatpush.msra.mxu0 0.0
  %1439 = vmatpush.msra.mxu0 0.0
  %1440 = vmatpush.msra.mxu0 0.0
  %1441 = vmatpush.msra.mxu0 0.0
  %1442 = vmatpush.msra.mxu0 0.0
  %1443 = vmatpush.msra.mxu0 0.0
  %1444 = vmatpush.msra.mxu0 %v1370
  %1445 = vmatpush.msra.mxu0 %v1369
  %1446 = vmatpush.msra.mxu0 %v1368
  %1447 = vmatpush.msra.mxu0 %v1367
  %1448 = vmatmul.f32.gmra.mxu0 %v1421
  %v1449 = vpop.f32.mrf.mxu0
  %v1450 = vadd.f32 %v1409, %v1449
  %1451 = vmatmul.f32.gmra.mxu0 %v1424
  %v1452 = vpop.f32.mrf.mxu0
  %v1453 = vadd.f32 %v1412, %v1452
  %1454 = vmatmul.f32.gmra.mxu0 %v1427
  %v1455 = vpop.f32.mrf.mxu0
  %v1456 = vadd.f32 %v1415, %v1455
  %1457 = vmatmul.f32.gmra.mxu0 %v1430
  %v1458 = vpop.f32.mrf.mxu0
  %v1459 = vadd.f32 %v1418, %v1458
  %1460 = vdwg.mxu0
  %v1461 = vld [vmem:[%s14] sm:$0x1]
  %v1463 = vperm.slane %v1461, 0
  %v1465 = vadd.f32 %v1450, %v1463
  %v1466 = vadd.f32 %v1453, %v1463
  %v1467 = vadd.f32 %v1456, %v1463
  %v1468 = vadd.f32 %v1459, %v1463
  %vm1469 = vcmask 97280
  %1470 = vst.msk [vmem:[%s15] sm:$0xff] %vm1469, %v1465
  %1471 = vst.msk [vmem:[%s15 + $0x8] sm:$0xff] %vm1469, %v1466
  %1472 = vst.msk [vmem:[%s15 + $0x10] sm:$0xff] %vm1469, %v1467
  %1473 = vst.msk [vmem:[%s15 + $0x18] sm:$0xff] %vm1469, %v1468
  // Predicated region
  $region62: #{decoder_future_forward.1} parent=0 // pred_check
    _
  $region63: #{decoder_future_forward.1} parent=0 // pred_check_branch
    %1475 = sbr.rel (0) target = $region65
  $region64: #{decoder_future_forward.1} parent=0 // pred_region
    _
  $region65: #{decoder_future_forward.1} parent=0 // pred_fallthru
    _
  // Predicated region
  $region66: #{decoder_future_forward.1} parent=0 // pred_check
    _
  $region67: #{decoder_future_forward.1} parent=0 // pred_check_branch
    %1477 = sbr.rel (0) target = $region69
  $region68: #{decoder_future_forward.1} parent=0 // pred_region
    _
  $region69: #{decoder_future_forward.1} parent=0 // pred_fallthru
    _

</llo_original>
